<compile_context>
chip_gen: v6e
topology: v6e:2x2x1
jax: 0.10.0
libtpu: 0.0.40
codegen_flags: <defaults>
</compile_context>

<pallas_src>
import functools

import jax
import jax.numpy as jnp
from jax.experimental import pallas as pl
from jax.experimental.pallas import tpu as pltpu


def _perceiver_encoder_kernel(dec_ref, enc_ref,
                              wq_ref, bq_ref, wkv_ref, bkv_ref,
                              wo_ref, bo_ref, gamma_ref, beta_ref,
                              out_ref,
                              q_sc, m_sc, l_sc, acc_sc,
                              *, heads, mxu_dtype):
    """Grid = (batch, dec_tiles): one batch row per step, online softmax over dec tiles."""
    d_step = pl.program_id(1)
    n_dec = pl.num_programs(1)

    s_enc, e_out = enc_ref.shape          # leading batch dim is squeezed by BlockSpec
    t_dec, emb = dec_ref.shape
    two_h = wkv_ref.shape[0]

    # ---- init (once per batch row): Q projection + online-softmax state --------
    @pl.when(d_step == 0)
    def _init():
        enc_h = jnp.broadcast_to(
            enc_ref[...].astype(mxu_dtype)[None], (heads, s_enc, e_out))
        # (H, S_enc, hd); 1/sqrt(hd) already folded into wq/bq at pack time.
        q = jnp.einsum("hse,hed->hsd", enc_h, wq_ref[...],
                       preferred_element_type=jnp.float32) + bq_ref[...]
        q_sc[...] = q.astype(q_sc.dtype)
        m_sc[...] = jnp.full_like(m_sc, -jnp.inf)
        l_sc[...] = jnp.zeros_like(l_sc)
        acc_sc[...] = jnp.zeros_like(acc_sc)

    # ---- K|V projection for this dec tile: ONE batched dot over 2*heads groups --
    dec_g = jnp.broadcast_to(
        dec_ref[...].astype(mxu_dtype)[None], (two_h, t_dec, emb))
    kv = jnp.einsum("gte,ged->gtd", dec_g, wkv_ref[...],
                    preferred_element_type=jnp.float32) + bkv_ref[...]
    k = kv[:heads].astype(mxu_dtype)       # (H, T, hd) leading-axis slices: whole tiles,
    v = kv[heads:].astype(mxu_dtype)       # no lane-axis shuffles

    # ---- online-softmax (flash) update, stats in f32 ----------------------------
    s = jnp.einsum("hqd,hkd->hqk", q_sc[...], k,
                   preferred_element_type=jnp.float32)          # (H, S_enc, T)
    m_prev = m_sc[...]
    m_new = jnp.maximum(m_prev, jnp.max(s, axis=-1, keepdims=True))
    alpha = jnp.exp(m_prev - m_new)
    p = jnp.exp(s - m_new)
    l_sc[...] = alpha * l_sc[...] + jnp.sum(p, axis=-1, keepdims=True)
    acc_sc[...] = alpha * acc_sc[...] + jnp.einsum(
        "hqk,hkd->hqd", p.astype(mxu_dtype), v, preferred_element_type=jnp.float32)
    m_sc[...] = m_new

    # ---- finalize (last dec tile): output proj + residual + LayerNorm -----------
    @pl.when(d_step == n_dec - 1)
    def _finalize():
        o = acc_sc[...] / l_sc[...]                               # exact softmax denom
        proj_h = jnp.einsum("hqd,hde->hqe", o.astype(mxu_dtype), wo_ref[...],
                            preferred_element_type=jnp.float32)  # (H, S_enc, E)
        x = jnp.sum(proj_h, axis=0) + bo_ref[...] + enc_ref[...].astype(jnp.float32)
        mean = jnp.mean(x, axis=-1, keepdims=True)
        var = jnp.mean((x - mean) ** 2, axis=-1, keepdims=True)
        y = (x - mean) * jax.lax.rsqrt(var + 1e-5) * gamma_ref[...] + beta_ref[...]
        out_ref[...] = y.astype(out_ref.dtype)                   # Dropout(p=0) == identity


def _pick_dec_tile(s_dec, emb, itemsize, target_bytes=1 << 20):
    """Largest multiple-of-8 divisor of S_dec whose (tile, emb) block is <= ~1 MiB."""
    if s_dec * emb * itemsize <= target_bytes:
        return s_dec
    best = None
    cap = max(8, target_bytes // max(1, emb * itemsize))
    for t in range(8, int(min(cap, s_dec)) + 1, 8):
        if s_dec % t == 0:
            best = t
    return best if best is not None else s_dec


def _vmem_limit_bytes(per_step_bytes):
    """Chip-aware scoped-VMEM limit: ~3/4 of physical (≈48 MiB v7x, ≈96 MiB v5e/v6e)."""
    cap = 128 << 20
    try:
        cap = int(pltpu.get_tpu_info().vmem_capacity_bytes)
    except Exception:
        try:
            if "v7" in jax.devices()[0].device_kind.lower():
                cap = 64 << 20
        except Exception:
            pass
    ceiling = (cap * 3) // 4
    want = max(2 * per_step_bytes + (8 << 20), 32 << 20)
    return int(max(min(want, ceiling), 16 << 20))


def perceiver_io_encoder_layer(dec, enc, params, *, heads, dec_tile=None,
                               mxu_dtype=jnp.bfloat16):
    B, S_dec, emb = dec.shape
    Bq, S_enc, E = enc.shape
    assert Bq == B
    d_hidden = params["wq"].shape[1]
    assert d_hidden % heads == 0
    hd = d_hidden // heads
    scale = 1.0 / (hd ** 0.5)
    f32 = jnp.float32

    # ---- one-time head-major weight packing (plain XLA, outside the kernel) -----
    # Q path: fold 1/sqrt(hd) into weights/bias; (E, H*hd) -> (H, E, hd).
    wq3 = jnp.transpose((params["wq"].astype(f32) * scale).reshape(E, heads, hd),
                        (1, 0, 2)).astype(mxu_dtype)                       # (H, E, hd)
    bq3 = jnp.transpose((params["bq"].astype(f32) * scale).reshape(1, heads, hd),
                        (1, 0, 2))                                         # (H, 1, hd) f32

    def _split_w(w):   # (emb, H*hd) -> (H, emb, hd)
        return jnp.transpose(w.astype(f32).reshape(emb, heads, hd), (1, 0, 2))

    def _split_b(b):   # (1, H*hd) -> (H, 1, hd)
        return jnp.transpose(b.astype(f32).reshape(1, heads, hd), (1, 0, 2))

    # K and V stacked on a (2*heads) group axis -> one batched projection dot.
    wkv = jnp.concatenate([_split_w(params["wk"]), _split_w(params["wv"])],
                          axis=0).astype(mxu_dtype)                        # (2H, emb, hd)
    bkv = jnp.concatenate([_split_b(params["bk"]), _split_b(params["bv"])], axis=0)
    # Output projection rows are already head-major: (H*hd, E) -> (H, hd, E).
    wo3 = params["wo"].astype(f32).reshape(heads, hd, E).astype(mxu_dtype)
    bo = params["bo"].astype(f32).reshape(1, E)
    gamma = params["gamma"].astype(f32).reshape(1, E)
    beta = params["beta"].astype(f32).reshape(1, E)

    # ---- tiling over S_dec (flash accumulation) + batch grid ---------------------
    if dec_tile is None:
        dec_tile = _pick_dec_tile(S_dec, emb, dec.dtype.itemsize)
    assert S_dec % dec_tile == 0 and (dec_tile % 8 == 0 or dec_tile == S_dec)
    n_dec = S_dec // dec_tile

    mxu_itemsize = jnp.dtype(mxu_dtype).itemsize
    weight_bytes = sum(int(w.size) * w.dtype.itemsize
                       for w in (wq3, bq3, wkv, bkv, wo3, bo, gamma, beta))
    per_step = (2 * dec_tile * emb * dec.dtype.itemsize            # dec (double-buffered)
                + 4 * S_enc * E * enc.dtype.itemsize               # enc + out blocks
                + 2 * weight_bytes                                 # replicated params
                + heads * S_enc * (hd * (mxu_itemsize + 4) + 8)    # q/m/l/acc scratch
                + 4 * heads * S_enc * dec_tile * 4                 # score/p temporaries
                + 2 * heads * dec_tile * (hd + emb) * 4)           # kv + broadcast dec

    kernel = functools.partial(_perceiver_encoder_kernel,
                               heads=heads, mxu_dtype=mxu_dtype)

    def _rep(arr):
        zeros = (0,) * arr.ndim
        return pl.BlockSpec(arr.shape, lambda b, d: zeros)   # grid-invariant params

    return pl.pallas_call(
        kernel,
        out_shape=jax.ShapeDtypeStruct((B, S_enc, E), enc.dtype),
        grid_spec=pltpu.PrefetchScalarGridSpec(
            num_scalar_prefetch=0,
            grid=(B, n_dec),
            in_specs=[
                pl.BlockSpec((None, dec_tile, emb), lambda b, d: (b, d, 0)),  # dec
                pl.BlockSpec((None, S_enc, E), lambda b, d: (b, 0, 0)),       # enc
                _rep(wq3), _rep(bq3), _rep(wkv), _rep(bkv),
                _rep(wo3), _rep(bo), _rep(gamma), _rep(beta),
            ],
            out_specs=pl.BlockSpec((None, S_enc, E), lambda b, d: (b, 0, 0)),
            scratch_shapes=[
                pltpu.VMEM((heads, S_enc, hd), mxu_dtype),    # q (held across dec tiles)
                pltpu.VMEM((heads, S_enc, 1), jnp.float32),   # m (running max)
                pltpu.VMEM((heads, S_enc, 1), jnp.float32),   # l (running denominator)
                pltpu.VMEM((heads, S_enc, hd), jnp.float32),  # acc (running numerator)
            ]),
        compiler_params=pltpu.CompilerParams(
            dimension_semantics=("parallel", "arbitrary"),
            vmem_limit_bytes=_vmem_limit_bytes(per_step)),
    )(dec, enc, wq3, bq3, wkv, bkv, wo3, bo, gamma, beta)


def _reference(dec, enc, params, *, heads):
    """Pure-JAX f32 reference of the same forward pass (exact softmax division)."""
    q = enc @ params["wq"] + params["bq"]
    k = dec @ params["wk"] + params["bk"]
    v = dec @ params["wv"] + params["bv"]
    d_hidden = q.shape[-1]
    hd = d_hidden // heads

    def split(x):  # (B, S, D) -> (B, H, S, hd)
        B, S, _ = x.shape
        return x.reshape(B, S, heads, hd).transpose(0, 2, 1, 3)

    qh, kh, vh = split(q), split(k), split(v)
    s = jnp.einsum("bhqd,bhkd->bhqk", qh, kh) / (hd ** 0.5)
    p = jax.nn.softmax(s, axis=-1)
    o = jnp.einsum("bhqk,bhkd->bhqd", p, vh)
    B, H, S, _ = o.shape
    o = o.transpose(0, 2, 1, 3).reshape(B, S, d_hidden)
    o = o @ params["wo"] + params["bo"]
    x = o + enc
    mean = jnp.mean(x, axis=-1, keepdims=True)
    var = jnp.mean((x - mean) ** 2, axis=-1, keepdims=True)
    xn = (x - mean) * jax.lax.rsqrt(var + 1e-5)
    return xn * params["gamma"] + params["beta"]


if __name__ == "__main__":
    # args: emb=32, encode_out=32, mapping_scalar=2, heads=2
    B, S_dec, S_enc = 2, 16, 8
    emb, encode_out, mapping_scalar, heads = 32, 32, 2, 2
    d_hidden = encode_out * mapping_scalar

    key = jax.random.PRNGKey(0)
    ks = jax.random.split(key, 8)
    dec = jax.random.normal(ks[0], (B, S_dec, emb), dtype=jnp.float32)
    enc = jax.random.normal(ks[1], (B, S_enc, encode_out), dtype=jnp.float32)

    params = {
        # Query projection: encode_out -> d_hidden (queries from enc / latents)
        "wq": jax.random.normal(ks[2], (encode_out, d_hidden), jnp.float32) * 0.1,
        "bq": jnp.zeros((1, d_hidden), jnp.float32),
        # Key / value projections: emb -> d_hidden (keys/values from dec / inputs)
        "wk": jax.random.normal(ks[3], (emb, d_hidden), jnp.float32) * 0.1,
        "bk": jnp.zeros((1, d_hidden), jnp.float32),
        "wv": jax.random.normal(ks[4], (emb, d_hidden), jnp.float32) * 0.1,
        "bv": jnp.zeros((1, d_hidden), jnp.float32),
        # Output projection: d_hidden -> encode_out
        "wo": jax.random.normal(ks[5], (d_hidden, encode_out), jnp.float32) * 0.1,
        "bo": jax.random.normal(ks[6], (1, encode_out), jnp.float32) * 0.01,
        # LayerNorm(encode_out): PyTorch default init (weight=1, bias=0)
        "gamma": jnp.ones((1, encode_out), jnp.float32),
        "beta": jnp.zeros((1, encode_out), jnp.float32),
    }

    ref = _reference(dec, enc, params, heads=heads)

    # dec_tile=8 -> 2 dec tiles, so the online-softmax accumulation path is exercised.
    # 1) f32 MXU path: bit-level parity check vs. reference.
    out_f32 = perceiver_io_encoder_layer(dec, enc, params, heads=heads,
                                         dec_tile=8, mxu_dtype=jnp.float32)
    out_f32 = jax.block_until_ready(out_f32)
    assert out_f32.shape == (B, S_enc, encode_out), out_f32.shape
    err_f32 = float(jnp.max(jnp.abs(out_f32 - ref)))
    assert jnp.allclose(out_f32, ref, atol=5e-4, rtol=5e-4), err_f32

    # 2) default bf16 MXU path (f32 accumulation / softmax stats / LayerNorm).
    out_bf16 = perceiver_io_encoder_layer(dec, enc, params, heads=heads, dec_tile=8)
    out_bf16 = jax.block_until_ready(out_bf16)
    err_bf16 = float(jnp.max(jnp.abs(out_bf16 - ref)))
    assert jnp.allclose(out_bf16, ref, atol=3e-2, rtol=3e-2), err_bf16

    print("KERNEL_OK")
</pallas_src>

<mosaic_0001>
module attributes {stable_mosaic.version = 11 : i64} {
  func.func @_perceiver_encoder_kernel(%arg0: i32, %arg1: i32, %arg2: memref<1x8x32xf32, #tpu.memory_space<vmem>>, %arg3: memref<1x8x32xf32, #tpu.memory_space<vmem>>, %arg4: memref<2x32x32xf32, #tpu.memory_space<vmem>>, %arg5: memref<2x1x32xf32, #tpu.memory_space<vmem>>, %arg6: memref<4x32x32xf32, #tpu.memory_space<vmem>>, %arg7: memref<4x1x32xf32, #tpu.memory_space<vmem>>, %arg8: memref<2x32x32xf32, #tpu.memory_space<vmem>>, %arg9: memref<1x32xf32, #tpu.memory_space<vmem>>, %arg10: memref<1x32xf32, #tpu.memory_space<vmem>>, %arg11: memref<1x32xf32, #tpu.memory_space<vmem>>, %arg12: memref<1x8x32xf32, #tpu.memory_space<vmem>>, %arg13: memref<2x8x32xf32, #tpu.memory_space<vmem>>, %arg14: memref<2x8x1xf32, #tpu.memory_space<vmem>>, %arg15: memref<2x8x1xf32, #tpu.memory_space<vmem>>, %arg16: memref<2x8x32xf32, #tpu.memory_space<vmem>>) attributes {dimension_semantics = [#tpu.dimension_semantics<parallel>, #tpu.dimension_semantics<arbitrary>], iteration_bounds = array<i64: 2, 2>, scalar_prefetch = 0 : i64, scratch_operands = 4 : i64, tpu.core_type = #tpu.core_type<tc>, window_params = [{transform_indices = @transform_0, window_bounds = array<i64: 1, 8, 32>}, {transform_indices = @transform_1, window_bounds = array<i64: 1, 8, 32>}, {pipeline_mode = #tpu.pipeline_mode<synchronous>, transform_indices = @transform_2, window_bounds = array<i64: 2, 32, 32>}, {pipeline_mode = #tpu.pipeline_mode<synchronous>, transform_indices = @transform_3, window_bounds = array<i64: 2, 1, 32>}, {pipeline_mode = #tpu.pipeline_mode<synchronous>, transform_indices = @transform_4, window_bounds = array<i64: 4, 32, 32>}, {pipeline_mode = #tpu.pipeline_mode<synchronous>, transform_indices = @transform_5, window_bounds = array<i64: 4, 1, 32>}, {pipeline_mode = #tpu.pipeline_mode<synchronous>, transform_indices = @transform_6, window_bounds = array<i64: 2, 32, 32>}, {pipeline_mode = #tpu.pipeline_mode<synchronous>, transform_indices = @transform_7, window_bounds = array<i64: 1, 32>}, {pipeline_mode = #tpu.pipeline_mode<synchronous>, transform_indices = @transform_8, window_bounds = array<i64: 1, 32>}, {pipeline_mode = #tpu.pipeline_mode<synchronous>, transform_indices = @transform_9, window_bounds = array<i64: 1, 32>}, {transform_indices = @transform_10, window_bounds = array<i64: 1, 8, 32>}]} {
    %c0_i32 = arith.constant 0 : i32
    %0 = arith.cmpi eq, %arg1, %c0_i32 : i32
    %1 = arith.extui %0 : i1 to i32
    %c0_i32_0 = arith.constant 0 : i32
    %2 = arith.cmpi ne, %1, %c0_i32_0 : i32
    scf.if %2 {
      %c0_35 = arith.constant 0 : index
      %c0_36 = arith.constant 0 : index
      %c0_37 = arith.constant 0 : index
      %42 = vector.load %arg3[%c0_35, %c0_36, %c0_37] : memref<1x8x32xf32, #tpu.memory_space<vmem>>, vector<1x8x32xf32>
      %43 = vector.shape_cast %42 : vector<1x8x32xf32> to vector<8x32xf32>
      %44 = vector.shape_cast %43 : vector<8x32xf32> to vector<1x8x32xf32>
      %45 = vector.shape_cast %44 : vector<1x8x32xf32> to vector<1x8x32xf32>
      %46 = vector.broadcast %45 : vector<1x8x32xf32> to vector<2x8x32xf32>
      %c0_38 = arith.constant 0 : index
      %c0_39 = arith.constant 0 : index
      %c0_40 = arith.constant 0 : index
      %47 = vector.load %arg4[%c0_38, %c0_39, %c0_40] : memref<2x32x32xf32, #tpu.memory_space<vmem>>, vector<2x32x32xf32>
      "tpu.trace_start"() <{level = 10 : i32, message = "hse,hed->hsd"}> : () -> ()
      %cst_41 = arith.constant dense<0.000000e+00> : vector<2x8x32xf32>
      %48 = tpu.matmul %46, %47, %cst_41 {dimension_numbers = #tpu.dot_dimension_numbers<[2], [1], [1], [2], [0, 0, 0, 1, 1, 2], [0], [0]>} : vector<2x8x32xf32>, vector<2x32x32xf32>, vector<2x8x32xf32> -> vector<2x8x32xf32>
      "tpu.trace_stop"() : () -> ()
      %c0_42 = arith.constant 0 : index
      %c0_43 = arith.constant 0 : index
      %c0_44 = arith.constant 0 : index
      %49 = vector.load %arg5[%c0_42, %c0_43, %c0_44] : memref<2x1x32xf32, #tpu.memory_space<vmem>>, vector<2x1x32xf32>
      %50 = vector.broadcast %49 : vector<2x1x32xf32> to vector<2x8x32xf32>
      %51 = arith.addf %48, %50 : vector<2x8x32xf32>
      %c0_45 = arith.constant 0 : index
      %c0_46 = arith.constant 0 : index
      %c0_47 = arith.constant 0 : index
      %52 = vector.load %arg13[%c0_45, %c0_46, %c0_47] : memref<2x8x32xf32, #tpu.memory_space<vmem>>, vector<2x8x32xf32>
      tpu.vector_store %arg13[%c0_45, %c0_46, %c0_47], %51 {strides = array<i32>} : memref<2x8x32xf32, #tpu.memory_space<vmem>>, vector<2x8x32xf32>,
      %cst_48 = arith.constant 0xFF800000 : f32
      %53 = vector.broadcast %cst_48 : f32 to vector<2x8x1xf32>
      %c0_49 = arith.constant 0 : index
      %c0_50 = arith.constant 0 : index
      %c0_51 = arith.constant 0 : index
      %54 = vector.load %arg14[%c0_49, %c0_50, %c0_51] : memref<2x8x1xf32, #tpu.memory_space<vmem>>, vector<2x8x1xf32>
      tpu.vector_store %arg14[%c0_49, %c0_50, %c0_51], %53 {strides = array<i32>} : memref<2x8x1xf32, #tpu.memory_space<vmem>>, vector<2x8x1xf32>,
      %cst_52 = arith.constant 0.000000e+00 : f32
      %55 = vector.broadcast %cst_52 : f32 to vector<2x8x1xf32>
      %c0_53 = arith.constant 0 : index
      %c0_54 = arith.constant 0 : index
      %c0_55 = arith.constant 0 : index
      %56 = vector.load %arg15[%c0_53, %c0_54, %c0_55] : memref<2x8x1xf32, #tpu.memory_space<vmem>>, vector<2x8x1xf32>
      tpu.vector_store %arg15[%c0_53, %c0_54, %c0_55], %55 {strides = array<i32>} : memref<2x8x1xf32, #tpu.memory_space<vmem>>, vector<2x8x1xf32>,
      %cst_56 = arith.constant 0.000000e+00 : f32
      %57 = vector.broadcast %cst_56 : f32 to vector<2x8x32xf32>
      %c0_57 = arith.constant 0 : index
      %c0_58 = arith.constant 0 : index
      %c0_59 = arith.constant 0 : index
      %58 = vector.load %arg16[%c0_57, %c0_58, %c0_59] : memref<2x8x32xf32, #tpu.memory_space<vmem>>, vector<2x8x32xf32>
      tpu.vector_store %arg16[%c0_57, %c0_58, %c0_59], %57 {strides = array<i32>} : memref<2x8x32xf32, #tpu.memory_space<vmem>>, vector<2x8x32xf32>,
    } else {
    }
    %c0 = arith.constant 0 : index
    %c0_1 = arith.constant 0 : index
    %c0_2 = arith.constant 0 : index
    %3 = vector.load %arg2[%c0, %c0_1, %c0_2] : memref<1x8x32xf32, #tpu.memory_space<vmem>>, vector<1x8x32xf32>
    %4 = vector.shape_cast %3 : vector<1x8x32xf32> to vector<8x32xf32>
    %5 = vector.shape_cast %4 : vector<8x32xf32> to vector<1x8x32xf32>
    %6 = vector.shape_cast %5 : vector<1x8x32xf32> to vector<1x8x32xf32>
    %7 = vector.broadcast %6 : vector<1x8x32xf32> to vector<4x8x32xf32>
    %c0_3 = arith.constant 0 : index
    %c0_4 = arith.constant 0 : index
    %c0_5 = arith.constant 0 : index
    %8 = vector.load %arg6[%c0_3, %c0_4, %c0_5] : memref<4x32x32xf32, #tpu.memory_space<vmem>>, vector<4x32x32xf32>
    "tpu.trace_start"() <{level = 10 : i32, message = "gte,ged->gtd"}> : () -> ()
    %cst = arith.constant dense<0.000000e+00> : vector<4x8x32xf32>
    %9 = tpu.matmul %7, %8, %cst {dimension_numbers = #tpu.dot_dimension_numbers<[2], [1], [1], [2], [0, 0, 0, 1, 1, 2], [0], [0]>} : vector<4x8x32xf32>, vector<4x32x32xf32>, vector<4x8x32xf32> -> vector<4x8x32xf32>
    "tpu.trace_stop"() : () -> ()
    %c0_6 = arith.constant 0 : index
    %c0_7 = arith.constant 0 : index
    %c0_8 = arith.constant 0 : index
    %10 = vector.load %arg7[%c0_6, %c0_7, %c0_8] : memref<4x1x32xf32, #tpu.memory_space<vmem>>, vector<4x1x32xf32>
    %11 = vector.broadcast %10 : vector<4x1x32xf32> to vector<4x8x32xf32>
    %12 = arith.addf %9, %11 : vector<4x8x32xf32>
    %13 = vector.extract_strided_slice %12 {offsets = [0, 0, 0], sizes = [2, 8, 32], strides = [1, 1, 1]} : vector<4x8x32xf32> to vector<2x8x32xf32>
    %14 = vector.extract_strided_slice %12 {offsets = [2, 0, 0], sizes = [2, 8, 32], strides = [1, 1, 1]} : vector<4x8x32xf32> to vector<2x8x32xf32>
    %c0_9 = arith.constant 0 : index
    %c0_10 = arith.constant 0 : index
    %c0_11 = arith.constant 0 : index
    %15 = vector.load %arg13[%c0_9, %c0_10, %c0_11] : memref<2x8x32xf32, #tpu.memory_space<vmem>>, vector<2x8x32xf32>
    "tpu.trace_start"() <{level = 10 : i32, message = "hqd,hkd->hqk"}> : () -> ()
    %cst_12 = arith.constant dense<0.000000e+00> : vector<2x8x8xf32>
    %16 = tpu.matmul %15, %13, %cst_12 {dimension_numbers = #tpu.dot_dimension_numbers<[2], [2], [1], [1], [0, 0, 0, 1, 1, 1], [0], [0]>} : vector<2x8x32xf32>, vector<2x8x32xf32>, vector<2x8x8xf32> -> vector<2x8x8xf32>
    "tpu.trace_stop"() : () -> ()
    %c0_13 = arith.constant 0 : index
    %c0_14 = arith.constant 0 : index
    %c0_15 = arith.constant 0 : index
    %17 = vector.load %arg14[%c0_13, %c0_14, %c0_15] : memref<2x8x1xf32, #tpu.memory_space<vmem>>, vector<2x8x1xf32>
    %cst_16 = arith.constant dense<0xFF800000> : vector<2x8xf32>
    %18 = vector.multi_reduction <maximumf>, %16, %cst_16 [2] : vector<2x8x8xf32> to vector<2x8xf32>
    %19 = vector.shape_cast %18 : vector<2x8xf32> to vector<2x8x1xf32>
    %20 = arith.maximumf %17, %19 : vector<2x8x1xf32>
    %21 = arith.subf %17, %20 : vector<2x8x1xf32>
    %22 = math.exp %21 : vector<2x8x1xf32>
    %23 = vector.broadcast %20 : vector<2x8x1xf32> to vector<2x8x8xf32>
    %24 = arith.subf %16, %23 : vector<2x8x8xf32>
    %25 = math.exp %24 : vector<2x8x8xf32>
    %c0_17 = arith.constant 0 : index
    %c0_18 = arith.constant 0 : index
    %c0_19 = arith.constant 0 : index
    %26 = vector.load %arg15[%c0_17, %c0_18, %c0_19] : memref<2x8x1xf32, #tpu.memory_space<vmem>>, vector<2x8x1xf32>
    %27 = arith.mulf %22, %26 : vector<2x8x1xf32>
    %cst_20 = arith.constant dense<0.000000e+00> : vector<2x8xf32>
    %28 = vector.multi_reduction <add>, %25, %cst_20 [2] : vector<2x8x8xf32> to vector<2x8xf32>
    %29 = vector.shape_cast %28 : vector<2x8xf32> to vector<2x8x1xf32>
    %30 = arith.addf %27, %29 : vector<2x8x1xf32>
    %c0_21 = arith.constant 0 : index
    %c0_22 = arith.constant 0 : index
    %c0_23 = arith.constant 0 : index
    %31 = vector.load %arg15[%c0_21, %c0_22, %c0_23] : memref<2x8x1xf32, #tpu.memory_space<vmem>>, vector<2x8x1xf32>
    tpu.vector_store %arg15[%c0_21, %c0_22, %c0_23], %30 {strides = array<i32>} : memref<2x8x1xf32, #tpu.memory_space<vmem>>, vector<2x8x1xf32>,
    %c0_24 = arith.constant 0 : index
    %c0_25 = arith.constant 0 : index
    %c0_26 = arith.constant 0 : index
    %32 = vector.load %arg16[%c0_24, %c0_25, %c0_26] : memref<2x8x32xf32, #tpu.memory_space<vmem>>, vector<2x8x32xf32>
    %33 = vector.broadcast %22 : vector<2x8x1xf32> to vector<2x8x32xf32>
    %34 = arith.mulf %33, %32 : vector<2x8x32xf32>
    "tpu.trace_start"() <{level = 10 : i32, message = "hqk,hkd->hqd"}> : () -> ()
    %cst_27 = arith.constant dense<0.000000e+00> : vector<2x8x32xf32>
    %35 = tpu.matmul %25, %14, %cst_27 {dimension_numbers = #tpu.dot_dimension_numbers<[2], [1], [1], [2], [0, 0, 0, 1, 1, 2], [0], [0]>} : vector<2x8x8xf32>, vector<2x8x32xf32>, vector<2x8x32xf32> -> vector<2x8x32xf32>
    "tpu.trace_stop"() : () -> ()
    %36 = arith.addf %34, %35 : vector<2x8x32xf32>
    %c0_28 = arith.constant 0 : index
    %c0_29 = arith.constant 0 : index
    %c0_30 = arith.constant 0 : index
    %37 = vector.load %arg16[%c0_28, %c0_29, %c0_30] : memref<2x8x32xf32, #tpu.memory_space<vmem>>, vector<2x8x32xf32>
    tpu.vector_store %arg16[%c0_28, %c0_29, %c0_30], %36 {strides = array<i32>} : memref<2x8x32xf32, #tpu.memory_space<vmem>>, vector<2x8x32xf32>,
    %c0_31 = arith.constant 0 : index
    %c0_32 = arith.constant 0 : index
    %c0_33 = arith.constant 0 : index
    %38 = vector.load %arg14[%c0_31, %c0_32, %c0_33] : memref<2x8x1xf32, #tpu.memory_space<vmem>>, vector<2x8x1xf32>
    tpu.vector_store %arg14[%c0_31, %c0_32, %c0_33], %20 {strides = array<i32>} : memref<2x8x1xf32, #tpu.memory_space<vmem>>, vector<2x8x1xf32>,
    %c1_i32 = arith.constant 1 : i32
    %39 = arith.cmpi eq, %arg1, %c1_i32 : i32
    %40 = arith.extui %39 : i1 to i32
    %c0_i32_34 = arith.constant 0 : i32
    %41 = arith.cmpi ne, %40, %c0_i32_34 : i32
    scf.if %41 {
      %c0_35 = arith.constant 0 : index
      %c0_36 = arith.constant 0 : index
      %c0_37 = arith.constant 0 : index
      %42 = vector.load %arg16[%c0_35, %c0_36, %c0_37] : memref<2x8x32xf32, #tpu.memory_space<vmem>>, vector<2x8x32xf32>
      %c0_38 = arith.constant 0 : index
      %c0_39 = arith.constant 0 : index
      %c0_40 = arith.constant 0 : index
      %43 = vector.load %arg15[%c0_38, %c0_39, %c0_40] : memref<2x8x1xf32, #tpu.memory_space<vmem>>, vector<2x8x1xf32>
      %44 = vector.broadcast %43 : vector<2x8x1xf32> to vector<2x8x32xf32>
      %45 = arith.divf %42, %44 : vector<2x8x32xf32>
      %c0_41 = arith.constant 0 : index
      %c0_42 = arith.constant 0 : index
      %c0_43 = arith.constant 0 : index
      %46 = vector.load %arg8[%c0_41, %c0_42, %c0_43] : memref<2x32x32xf32, #tpu.memory_space<vmem>>, vector<2x32x32xf32>
      "tpu.trace_start"() <{level = 10 : i32, message = "hqd,hde->hqe"}> : () -> ()
      %cst_44 = arith.constant dense<0.000000e+00> : vector<2x8x32xf32>
      %47 = tpu.matmul %45, %46, %cst_44 {dimension_numbers = #tpu.dot_dimension_numbers<[2], [1], [1], [2], [0, 0, 0, 1, 1, 2], [0], [0]>} : vector<2x8x32xf32>, vector<2x32x32xf32>, vector<2x8x32xf32> -> vector<2x8x32xf32>
      "tpu.trace_stop"() : () -> ()
      %cst_45 = arith.constant dense<0.000000e+00> : vector<8x32xf32>
      %48 = vector.multi_reduction <add>, %47, %cst_45 [0] : vector<2x8x32xf32> to vector<8x32xf32>
      %c0_46 = arith.constant 0 : index
      %c0_47 = arith.constant 0 : index
      %49 = vector.load %arg9[%c0_46, %c0_47] : memref<1x32xf32, #tpu.memory_space<vmem>>, vector<1x32xf32>
      %50 = vector.broadcast %49 : vector<1x32xf32> to vector<8x32xf32>
      %51 = arith.addf %48, %50 : vector<8x32xf32>
      %c0_48 = arith.constant 0 : index
      %c0_49 = arith.constant 0 : index
      %c0_50 = arith.constant 0 : index
      %52 = vector.load %arg3[%c0_48, %c0_49, %c0_50] : memref<1x8x32xf32, #tpu.memory_space<vmem>>, vector<1x8x32xf32>
      %53 = vector.shape_cast %52 : vector<1x8x32xf32> to vector<8x32xf32>
      %54 = arith.addf %51, %53 : vector<8x32xf32>
      %cst_51 = arith.constant dense<0.000000e+00> : vector<8xf32>
      %55 = vector.multi_reduction <add>, %54, %cst_51 [1] : vector<8x32xf32> to vector<8xf32>
      %56 = vector.shape_cast %55 : vector<8xf32> to vector<8x1xf32>
      %cst_52 = arith.constant 3.200000e+01 : f32
      %57 = vector.broadcast %cst_52 : f32 to vector<8x1xf32>
      %58 = arith.divf %56, %57 : vector<8x1xf32>
      %59 = vector.broadcast %58 : vector<8x1xf32> to vector<8x32xf32>
      %60 = arith.subf %54, %59 : vector<8x32xf32>
      %61 = arith.mulf %60, %60 : vector<8x32xf32>
      %cst_53 = arith.constant dense<0.000000e+00> : vector<8xf32>
      %62 = vector.multi_reduction <add>, %61, %cst_53 [1] : vector<8x32xf32> to vector<8xf32>
      %63 = vector.shape_cast %62 : vector<8xf32> to vector<8x1xf32>
      %cst_54 = arith.constant 3.200000e+01 : f32
      %64 = vector.broadcast %cst_54 : f32 to vector<8x1xf32>
      %65 = arith.divf %63, %64 : vector<8x1xf32>
      %66 = vector.broadcast %58 : vector<8x1xf32> to vector<8x32xf32>
      %67 = arith.subf %54, %66 : vector<8x32xf32>
      %cst_55 = arith.constant 9.99999974E-6 : f32
      %68 = vector.broadcast %cst_55 : f32 to vector<8x1xf32>
      %69 = arith.addf %65, %68 : vector<8x1xf32>
      %70 = math.rsqrt %69 : vector<8x1xf32>
      %71 = vector.broadcast %70 : vector<8x1xf32> to vector<8x32xf32>
      %72 = arith.mulf %67, %71 : vector<8x32xf32>
      %c0_56 = arith.constant 0 : index
      %c0_57 = arith.constant 0 : index
      %73 = vector.load %arg10[%c0_56, %c0_57] : memref<1x32xf32, #tpu.memory_space<vmem>>, vector<1x32xf32>
      %74 = vector.broadcast %73 : vector<1x32xf32> to vector<8x32xf32>
      %75 = arith.mulf %72, %74 : vector<8x32xf32>
      %c0_58 = arith.constant 0 : index
      %c0_59 = arith.constant 0 : index
      %76 = vector.load %arg11[%c0_58, %c0_59] : memref<1x32xf32, #tpu.memory_space<vmem>>, vector<1x32xf32>
      %77 = vector.broadcast %76 : vector<1x32xf32> to vector<8x32xf32>
      %78 = arith.addf %75, %77 : vector<8x32xf32>
      %c0_60 = arith.constant 0 : index
      %c0_61 = arith.constant 0 : index
      %c0_62 = arith.constant 0 : index
      %79 = vector.load %arg12[%c0_60, %c0_61, %c0_62] : memref<1x8x32xf32, #tpu.memory_space<vmem>>, vector<1x8x32xf32>
      %80 = vector.shape_cast %79 : vector<1x8x32xf32> to vector<8x32xf32>
      %81 = vector.shape_cast %78 : vector<8x32xf32> to vector<1x8x32xf32>
      tpu.vector_store %arg12[%c0_60, %c0_61, %c0_62], %81 {strides = array<i32>} : memref<1x8x32xf32, #tpu.memory_space<vmem>>, vector<1x8x32xf32>,
    } else {
    }
    return
  }
  func.func @transform_0(%arg0: i32, %arg1: i32) -> (i32, i32, i32) {
    %c0_i32 = arith.constant 0 : i32
    %c0_i32_0 = arith.constant 0 : i32
    return %arg0, %arg1, %c0_i32 : i32, i32, i32
  }
  func.func @transform_1(%arg0: i32, %arg1: i32) -> (i32, i32, i32) {
    %c0_i32 = arith.constant 0 : i32
    %c0_i32_0 = arith.constant 0 : i32
    %c0_i32_1 = arith.constant 0 : i32
    return %arg0, %c0_i32, %c0_i32_0 : i32, i32, i32
  }
  func.func @transform_2(%arg0: i32, %arg1: i32) -> (i32, i32, i32) {
    %c0_i32 = arith.constant 0 : i32
    %c0_i32_0 = arith.constant 0 : i32
    %c0_i32_1 = arith.constant 0 : i32
    %c0_i32_2 = arith.constant 0 : i32
    return %c0_i32, %c0_i32_0, %c0_i32_1 : i32, i32, i32
  }
  func.func @transform_3(%arg0: i32, %arg1: i32) -> (i32, i32, i32) {
    %c0_i32 = arith.constant 0 : i32
    %c0_i32_0 = arith.constant 0 : i32
    %c0_i32_1 = arith.constant 0 : i32
    %c0_i32_2 = arith.constant 0 : i32
    return %c0_i32, %c0_i32_0, %c0_i32_1 : i32, i32, i32
  }
  func.func @transform_4(%arg0: i32, %arg1: i32) -> (i32, i32, i32) {
    %c0_i32 = arith.constant 0 : i32
    %c0_i32_0 = arith.constant 0 : i32
    %c0_i32_1 = arith.constant 0 : i32
    %c0_i32_2 = arith.constant 0 : i32
    return %c0_i32, %c0_i32_0, %c0_i32_1 : i32, i32, i32
  }
  func.func @transform_5(%arg0: i32, %arg1: i32) -> (i32, i32, i32) {
    %c0_i32 = arith.constant 0 : i32
    %c0_i32_0 = arith.constant 0 : i32
    %c0_i32_1 = arith.constant 0 : i32
    %c0_i32_2 = arith.constant 0 : i32
    return %c0_i32, %c0_i32_0, %c0_i32_1 : i32, i32, i32
  }
  func.func @transform_6(%arg0: i32, %arg1: i32) -> (i32, i32, i32) {
    %c0_i32 = arith.constant 0 : i32
    %c0_i32_0 = arith.constant 0 : i32
    %c0_i32_1 = arith.constant 0 : i32
    %c0_i32_2 = arith.constant 0 : i32
    return %c0_i32, %c0_i32_0, %c0_i32_1 : i32, i32, i32
  }
  func.func @transform_7(%arg0: i32, %arg1: i32) -> (i32, i32) {
    %c0_i32 = arith.constant 0 : i32
    %c0_i32_0 = arith.constant 0 : i32
    %c0_i32_1 = arith.constant 0 : i32
    return %c0_i32, %c0_i32_0 : i32, i32
  }
  func.func @transform_8(%arg0: i32, %arg1: i32) -> (i32, i32) {
    %c0_i32 = arith.constant 0 : i32
    %c0_i32_0 = arith.constant 0 : i32
    %c0_i32_1 = arith.constant 0 : i32
    return %c0_i32, %c0_i32_0 : i32, i32
  }
  func.func @transform_9(%arg0: i32, %arg1: i32) -> (i32, i32) {
    %c0_i32 = arith.constant 0 : i32
    %c0_i32_0 = arith.constant 0 : i32
    %c0_i32_1 = arith.constant 0 : i32
    return %c0_i32, %c0_i32_0 : i32, i32
  }
  func.func @transform_10(%arg0: i32, %arg1: i32) -> (i32, i32, i32) {
    %c0_i32 = arith.constant 0 : i32
    %c0_i32_0 = arith.constant 0 : i32
    %c0_i32_1 = arith.constant 0 : i32
    return %arg0, %c0_i32, %c0_i32_0 : i32, i32, i32
  }
}

</mosaic_0001>

<llo_original>
// kernel: tpu_custom_call.1
$region0: #{tpu_custom_call.1}
  #allocation0 [shape = 'u32[]', space=smem, size = 0x4, offset = 0x4, fixed_abs, tag = 'smem constant byte address 0x4 - core index']
  #allocation1 [shape = 'u32[144,128]{1,0:T(1,128)}', space=vmem, size = 0x12000, scoped, tag = 'internal scratch']
  #allocation2 [shape = 'f32[2,8,32]{2,1,0:T(8,128)}', space=vmem, size = 0x2000, scoped, tag = 'scratch operand']
  #allocation3 [shape = 'f32[2,8,1]{2,1,0:T(8,128)}', space=vmem, size = 0x2000, scoped, tag = 'scratch operand']
  #allocation4 [shape = 'f32[2,8,1]{2,1,0:T(8,128)}', space=vmem, size = 0x2000, scoped, tag = 'scratch operand']
  #allocation5 [shape = 'f32[2,8,32]{2,1,0:T(8,128)}', space=vmem, size = 0x2000, scoped, tag = 'scratch operand']
  %s0 = inlined_call_operand.hbm [shape: f32[2,16,32], index: 0, kind: input, shape index: {}]
  %s1 = inlined_call_operand.hbm [shape: f32[2,8,32], index: 1, kind: input, shape index: {}]
  %s2 = inlined_call_operand.hbm [shape: f32[2,32,32], index: 2, kind: input, shape index: {}]
  %s3 = inlined_call_operand.vmem [shape: f32[2,1,32], index: 3, kind: input, shape index: {}]
  %s4 = inlined_call_operand.hbm [shape: f32[4,32,32], index: 4, kind: input, shape index: {}]
  %s5 = inlined_call_operand.vmem [shape: f32[4,1,32], index: 5, kind: input, shape index: {}]
  %s6 = inlined_call_operand.hbm [shape: f32[2,32,32], index: 6, kind: input, shape index: {}]
  %s7 = inlined_call_operand.vmem [shape: f32[1,32], index: 7, kind: input, shape index: {}]
  %s8 = inlined_call_operand.vmem [shape: f32[1,32], index: 8, kind: input, shape index: {}]
  %s9 = inlined_call_operand.vmem [shape: f32[1,32], index: 9, kind: input, shape index: {}]
  %s10 = inlined_call_operand.hbm [shape: f32[2,8,32], index: 10, kind: output, shape index: {}]
  %s11 = sld [smem:[#allocation0]]
  $region101: #{tpu_custom_call.1} parent=0
    _
  %s13 = ssub.s32 1, %s11
  %s14 = scalar_select 0, %s13, %s11
  $region1: #{tpu_custom_call.1} parent=0
    #allocation6 [shape = 'u8[8192]{0}', space=vmem, size = 0x2000, scoped, tag = 'input window, operand 0']
    #allocation7 [shape = 's32[2]{0}', space=sflag, size = 0x8, scoped, tag = 'scoped memory for tpu_custom_call.1']
    #allocation8 [shape = 's32[2]{0}', space=sflag, size = 0x8, scoped, tag = 'scoped memory for tpu_custom_call.1']
    #allocation9 [shape = 'u8[8192]{0}', space=vmem, size = 0x2000, scoped, tag = 'input window, operand 1']
    #allocation10 [shape = 's32[2]{0}', space=sflag, size = 0x8, scoped, tag = 'scoped memory for tpu_custom_call.1']
    #allocation11 [shape = 'u8[32768]{0}', space=vmem, size = 0x8000, scoped, tag = 'input window, operand 2, single buffered']
    #allocation12 [shape = 'u8[65536]{0}', space=vmem, size = 0x10000, scoped, tag = 'input window, operand 4, single buffered']
    #allocation13 [shape = 's32[1]{0}', space=sflag, size = 0x4, scoped, tag = 'scoped memory for tpu_custom_call.1']
    #allocation14 [shape = 'u8[32768]{0}', space=vmem, size = 0x8000, scoped, tag = 'input window, operand 6, single buffered']
    #allocation15 [shape = 'u8[8192]{0}', space=vmem, size = 0x2000, scoped, tag = 'output window, operand 0']
    %15 = vsyncpa [#allocation7], 0
    %s16 = scalar_lea.sflag [#allocation7], 1
    %17 = vsyncpa %s16, 0
    %18 = vsyncpa [#allocation10], 0
    %s19 = scalar_lea.sflag [#allocation10], 1
    %20 = vsyncpa %s19, 0
    %21 = vsyncpa [#allocation13], 0
    %22 = vsyncpa [#allocation8], 0
    %s23 = scalar_lea.sflag [#allocation8], 1
    %24 = vsyncpa %s23, 0
    loop: start=0, step=1, limit=6
    $region2: #{tpu_custom_call.1} parent=1 // loop_pre_header
      _
    $region3: #{tpu_custom_call.1} parent=1 // loop_header
      %s26 = sphi 0, %s30
      %p27 = scmp.ge.s32.totalorder %s26, 6
      %s33 = sphi 0, %s45
      %s34 = sphi 0, %s41
      %s35 = sphi 0, %s33
      %s36 = sphi 0, %s34
      %s37 = sphi 0, %s35
      %s38 = sphi 0, %s36
      %s50 = sphi 0, %s52
      %s53 = sphi 0, %s50
      %s54 = sphi 0, %s53
      %s70 = sphi 0, %s54
      %s76 = sphi 0, %s78
      %s79 = sphi 0, %s76
      %s80 = sphi 0, %s79
      %s96 = sphi 0, %s80
      %s100 = sphi 0, %s100
      %s102 = sphi 0, %s100
      %s103 = sphi 0, %s102
      %s117 = sphi 0, %s103
      %s121 = sphi 0, %s121
      %s123 = sphi 0, %s121
      %s124 = sphi 0, %s123
      %s138 = sphi 0, %s124
      %s142 = sphi 0, %s142
      %s144 = sphi 0, %s142
      %s145 = sphi 0, %s144
      %s159 = sphi 0, %s145
      %s163 = sphi 0, %s163
      %s165 = sphi 0, %s163
      %s166 = sphi 0, %s165
      %s180 = sphi 0, %s166
      %s184 = sphi 0, %s184
      %s186 = sphi 0, %s184
      %s187 = sphi 0, %s186
      %s201 = sphi 0, %s187
      %s205 = sphi 0, %s205
      %s207 = sphi 0, %s205
      %s208 = sphi 0, %s207
      %s222 = sphi 0, %s208
      %s226 = sphi 0, %s226
      %s228 = sphi 0, %s226
      %s229 = sphi 0, %s228
      %s243 = sphi 0, %s229
      %s247 = sphi 0, %s247
      %s249 = sphi 0, %s247
      %s250 = sphi 0, %s249
      %s264 = sphi 0, %s250
      %s270 = sphi 0, %s272
      %s273 = sphi 0, %s270
      %s274 = sphi 0, %s273
      %s290 = sphi 0, %s274
    $region4: #{tpu_custom_call.1} parent=1 // loop_header_branch
      %29 = sbr.rel (%p27) target = $region8
    $region5: #{tpu_custom_call.1} parent=1 // loop_body
      %s31 = ssub.s32 %s26, 1
      %s32 = ssub.s32 %s26, 2
      %s39 = sadd.s32 1, %s34
      %p40 = scmp.ge.s32.totalorder %s39, 2
      %s41 = scalar_select %p40, 0, %s39
      %s42 = sadd.s32 1, %s33
      %s43 = scalar_select %p40, %s42, %s33
      %p44 = scmp.ge.s32.totalorder %s43, 2
      %s45 = scalar_select %p44, 0, %s43
      %s46 = ssub.s32 %s33, %s45
      %s47 = ssub.s32 %s34, %s41
      %s48 = sor.u32 %s46, %s47
      %p49 = scmp.eq.s32.totalorder %s48, 0
      %s51 = sadd.s32 %s50, 1
      %s52 = scalar_select %p49, %s50, %s51
      %p55 = pneg %p49
      %p56 = scmp.eq.s32.totalorder %s26, 3
      %p57 = por %p55, %p56
      %p58 = scmp.ne.s32.totalorder %s50, %s53
      %p59 = scmp.eq.s32.totalorder %s26, 0
      %p60 = por %p58, %p59
      %p61 = scmp.ne.s32.totalorder %s50, %s53
      %p62 = scmp.eq.s32.totalorder %s31, 3
      %p63 = por %p61, %p62
      %p64 = scmp.ne.s32.totalorder %s53, %s54
      %p65 = scmp.eq.s32.totalorder %s31, 0
      %p66 = por %p64, %p65
      %p67 = scmp.ne.s32.totalorder %s53, %s54
      %p68 = scmp.eq.s32.totalorder %s32, 3
      %p69 = por %p67, %p68
      %p71 = scmp.ne.s32.totalorder %s54, %s70
      %p72 = scmp.eq.s32.totalorder %s32, 0
      %p73 = por %p71, %p72
      %s74 = ssub.s32 %s33, %s45
      %p75 = scmp.eq.s32.totalorder %s74, 0
      %s77 = sadd.s32 %s76, 1
      %s78 = scalar_select %p75, %s76, %s77
      %p81 = pneg %p75
      %p82 = scmp.eq.s32.totalorder %s26, 3
      %p83 = por %p81, %p82
      %p84 = scmp.ne.s32.totalorder %s76, %s79
      %p85 = scmp.eq.s32.totalorder %s26, 0
      %p86 = por %p84, %p85
      %p87 = scmp.ne.s32.totalorder %s76, %s79
      %p88 = scmp.eq.s32.totalorder %s31, 3
      %p89 = por %p87, %p88
      %p90 = scmp.ne.s32.totalorder %s79, %s80
      %p91 = scmp.eq.s32.totalorder %s31, 0
      %p92 = por %p90, %p91
      %p93 = scmp.ne.s32.totalorder %s79, %s80
      %p94 = scmp.eq.s32.totalorder %s32, 3
      %p95 = por %p93, %p94
      %p97 = scmp.ne.s32.totalorder %s80, %s96
      %p98 = scmp.eq.s32.totalorder %s32, 0
      %p99 = por %p97, %p98
      %s101 = sadd.s32 %s100, 1
      %p104 = scmp.eq.s32.totalorder %s26, 3
      %p105 = scmp.ne.s32.totalorder %s100, %s102
      %p106 = scmp.eq.s32.totalorder %s26, 0
      %p107 = por %p105, %p106
      %p108 = scmp.ne.s32.totalorder %s100, %s102
      %p109 = scmp.eq.s32.totalorder %s31, 3
      %p110 = por %p108, %p109
      %p111 = scmp.ne.s32.totalorder %s102, %s103
      %p112 = scmp.eq.s32.totalorder %s31, 0
      %p113 = por %p111, %p112
      %p114 = scmp.ne.s32.totalorder %s102, %s103
      %p115 = scmp.eq.s32.totalorder %s32, 3
      %p116 = por %p114, %p115
      %p118 = scmp.ne.s32.totalorder %s103, %s117
      %p119 = scmp.eq.s32.totalorder %s32, 0
      %p120 = por %p118, %p119
      %s122 = sadd.s32 %s121, 1
      %p125 = scmp.eq.s32.totalorder %s26, 3
      %p126 = scmp.ne.s32.totalorder %s121, %s123
      %p127 = scmp.eq.s32.totalorder %s26, 0
      %p128 = por %p126, %p127
      %p129 = scmp.ne.s32.totalorder %s121, %s123
      %p130 = scmp.eq.s32.totalorder %s31, 3
      %p131 = por %p129, %p130
      %p132 = scmp.ne.s32.totalorder %s123, %s124
      %p133 = scmp.eq.s32.totalorder %s31, 0
      %p134 = por %p132, %p133
      %p135 = scmp.ne.s32.totalorder %s123, %s124
      %p136 = scmp.eq.s32.totalorder %s32, 3
      %p137 = por %p135, %p136
      %p139 = scmp.ne.s32.totalorder %s124, %s138
      %p140 = scmp.eq.s32.totalorder %s32, 0
      %p141 = por %p139, %p140
      %s143 = sadd.s32 %s142, 1
      %p146 = scmp.eq.s32.totalorder %s26, 3
      %p147 = scmp.ne.s32.totalorder %s142, %s144
      %p148 = scmp.eq.s32.totalorder %s26, 0
      %p149 = por %p147, %p148
      %p150 = scmp.ne.s32.totalorder %s142, %s144
      %p151 = scmp.eq.s32.totalorder %s31, 3
      %p152 = por %p150, %p151
      %p153 = scmp.ne.s32.totalorder %s144, %s145
      %p154 = scmp.eq.s32.totalorder %s31, 0
      %p155 = por %p153, %p154
      %p156 = scmp.ne.s32.totalorder %s144, %s145
      %p157 = scmp.eq.s32.totalorder %s32, 3
      %p158 = por %p156, %p157
      %p160 = scmp.ne.s32.totalorder %s145, %s159
      %p161 = scmp.eq.s32.totalorder %s32, 0
      %p162 = por %p160, %p161
      %s164 = sadd.s32 %s163, 1
      %p167 = scmp.eq.s32.totalorder %s26, 3
      %p168 = scmp.ne.s32.totalorder %s163, %s165
      %p169 = scmp.eq.s32.totalorder %s26, 0
      %p170 = por %p168, %p169
      %p171 = scmp.ne.s32.totalorder %s163, %s165
      %p172 = scmp.eq.s32.totalorder %s31, 3
      %p173 = por %p171, %p172
      %p174 = scmp.ne.s32.totalorder %s165, %s166
      %p175 = scmp.eq.s32.totalorder %s31, 0
      %p176 = por %p174, %p175
      %p177 = scmp.ne.s32.totalorder %s165, %s166
      %p178 = scmp.eq.s32.totalorder %s32, 3
      %p179 = por %p177, %p178
      %p181 = scmp.ne.s32.totalorder %s166, %s180
      %p182 = scmp.eq.s32.totalorder %s32, 0
      %p183 = por %p181, %p182
      %s185 = sadd.s32 %s184, 1
      %p188 = scmp.eq.s32.totalorder %s26, 3
      %p189 = scmp.ne.s32.totalorder %s184, %s186
      %p190 = scmp.eq.s32.totalorder %s26, 0
      %p191 = por %p189, %p190
      %p192 = scmp.ne.s32.totalorder %s184, %s186
      %p193 = scmp.eq.s32.totalorder %s31, 3
      %p194 = por %p192, %p193
      %p195 = scmp.ne.s32.totalorder %s186, %s187
      %p196 = scmp.eq.s32.totalorder %s31, 0
      %p197 = por %p195, %p196
      %p198 = scmp.ne.s32.totalorder %s186, %s187
      %p199 = scmp.eq.s32.totalorder %s32, 3
      %p200 = por %p198, %p199
      %p202 = scmp.ne.s32.totalorder %s187, %s201
      %p203 = scmp.eq.s32.totalorder %s32, 0
      %p204 = por %p202, %p203
      %s206 = sadd.s32 %s205, 1
      %p209 = scmp.eq.s32.totalorder %s26, 3
      %p210 = scmp.ne.s32.totalorder %s205, %s207
      %p211 = scmp.eq.s32.totalorder %s26, 0
      %p212 = por %p210, %p211
      %p213 = scmp.ne.s32.totalorder %s205, %s207
      %p214 = scmp.eq.s32.totalorder %s31, 3
      %p215 = por %p213, %p214
      %p216 = scmp.ne.s32.totalorder %s207, %s208
      %p217 = scmp.eq.s32.totalorder %s31, 0
      %p218 = por %p216, %p217
      %p219 = scmp.ne.s32.totalorder %s207, %s208
      %p220 = scmp.eq.s32.totalorder %s32, 3
      %p221 = por %p219, %p220
      %p223 = scmp.ne.s32.totalorder %s208, %s222
      %p224 = scmp.eq.s32.totalorder %s32, 0
      %p225 = por %p223, %p224
      %s227 = sadd.s32 %s226, 1
      %p230 = scmp.eq.s32.totalorder %s26, 3
      %p231 = scmp.ne.s32.totalorder %s226, %s228
      %p232 = scmp.eq.s32.totalorder %s26, 0
      %p233 = por %p231, %p232
      %p234 = scmp.ne.s32.totalorder %s226, %s228
      %p235 = scmp.eq.s32.totalorder %s31, 3
      %p236 = por %p234, %p235
      %p237 = scmp.ne.s32.totalorder %s228, %s229
      %p238 = scmp.eq.s32.totalorder %s31, 0
      %p239 = por %p237, %p238
      %p240 = scmp.ne.s32.totalorder %s228, %s229
      %p241 = scmp.eq.s32.totalorder %s32, 3
      %p242 = por %p240, %p241
      %p244 = scmp.ne.s32.totalorder %s229, %s243
      %p245 = scmp.eq.s32.totalorder %s32, 0
      %p246 = por %p244, %p245
      %s248 = sadd.s32 %s247, 1
      %p251 = scmp.eq.s32.totalorder %s26, 3
      %p252 = scmp.ne.s32.totalorder %s247, %s249
      %p253 = scmp.eq.s32.totalorder %s26, 0
      %p254 = por %p252, %p253
      %p255 = scmp.ne.s32.totalorder %s247, %s249
      %p256 = scmp.eq.s32.totalorder %s31, 3
      %p257 = por %p255, %p256
      %p258 = scmp.ne.s32.totalorder %s249, %s250
      %p259 = scmp.eq.s32.totalorder %s31, 0
      %p260 = por %p258, %p259
      %p261 = scmp.ne.s32.totalorder %s249, %s250
      %p262 = scmp.eq.s32.totalorder %s32, 3
      %p263 = por %p261, %p262
      %p265 = scmp.ne.s32.totalorder %s250, %s264
      %p266 = scmp.eq.s32.totalorder %s32, 0
      %p267 = por %p265, %p266
      %s268 = ssub.s32 %s33, %s45
      %p269 = scmp.eq.s32.totalorder %s268, 0
      %s271 = sadd.s32 %s270, 1
      %s272 = scalar_select %p269, %s270, %s271
      %p275 = pneg %p269
      %p276 = scmp.eq.s32.totalorder %s26, 3
      %p277 = por %p275, %p276
      %p278 = scmp.ne.s32.totalorder %s270, %s273
      %p279 = scmp.eq.s32.totalorder %s26, 0
      %p280 = por %p278, %p279
      %p281 = scmp.ne.s32.totalorder %s270, %s273
      %p282 = scmp.eq.s32.totalorder %s31, 3
      %p283 = por %p281, %p282
      %p284 = scmp.ne.s32.totalorder %s273, %s274
      %p285 = scmp.eq.s32.totalorder %s31, 0
      %p286 = por %p284, %p285
      %p287 = scmp.ne.s32.totalorder %s273, %s274
      %p288 = scmp.eq.s32.totalorder %s32, 3
      %p289 = por %p287, %p288
      %p291 = scmp.ne.s32.totalorder %s274, %s290
      %p292 = scmp.eq.s32.totalorder %s32, 0
      %p293 = por %p291, %p292
      %p294 = scmp.le.s32.totalorder 1, %s26
      %p295 = scmp.lt.s32.totalorder %s26, 5
      %p296 = pnand %p294, %p295
      %p297 = pneg %p296
      // Predicated region
      $region9: #{tpu_custom_call.1} parent=5 // pred_check
        _
      $region10: #{tpu_custom_call.1} parent=5 // pred_check_branch
        %299 = sbr.rel (%p296) target = $region12
      $region11: #{tpu_custom_call.1} parent=5 // pred_region
        %s300 = ssub.s32 %s26, 1
        // Predicated region
        $region13: #{tpu_custom_call.1} parent=11 // pred_check
          %p301 = pneg %p113
        $region14: #{tpu_custom_call.1} parent=11 // pred_check_branch
          %303 = sbr.rel (%p301) target = $region16
        $region15: #{tpu_custom_call.1} parent=11 // pred_region
          %s305 = ssub.s32 1024, 1024
          %306 = vsyncadd [#allocation10], %s305
          %s307 = sshll.u32 [#allocation11], 4
          %s308 = int_to_ptr.vmem [resolvable:$true] %s307
          %313 = dma.hbm_to_vmem [thread:$0]  %s2, 1024, %s308, [#allocation10], 128, 128, 8
        $region16: #{tpu_custom_call.1} parent=11 // pred_fallthru
          _
        // Predicated region
        $region17: #{tpu_custom_call.1} parent=11 // pred_check
          %p314 = pneg %p134
        $region18: #{tpu_custom_call.1} parent=11 // pred_check_branch
          %316 = sbr.rel (%p314) target = $region20
        $region19: #{tpu_custom_call.1} parent=11 // pred_region
          _
        $region20: #{tpu_custom_call.1} parent=11 // pred_fallthru
          _
        // Predicated region
        $region21: #{tpu_custom_call.1} parent=11 // pred_check
          %p317 = pneg %p155
        $region22: #{tpu_custom_call.1} parent=11 // pred_check_branch
          %319 = sbr.rel (%p317) target = $region24
        $region23: #{tpu_custom_call.1} parent=11 // pred_region
          %s321 = ssub.s32 2048, 2048
          %322 = vsyncadd [#allocation13], %s321
          %s323 = sshll.u32 [#allocation12], 4
          %s324 = int_to_ptr.vmem [resolvable:$true] %s323
          %329 = dma.hbm_to_vmem [thread:$0]  %s4, 2048, %s324, [#allocation13], 128, 128, 8
        $region24: #{tpu_custom_call.1} parent=11 // pred_fallthru
          _
        // Predicated region
        $region25: #{tpu_custom_call.1} parent=11 // pred_check
          %p330 = pneg %p176
        $region26: #{tpu_custom_call.1} parent=11 // pred_check_branch
          %332 = sbr.rel (%p330) target = $region28
        $region27: #{tpu_custom_call.1} parent=11 // pred_region
          _
        $region28: #{tpu_custom_call.1} parent=11 // pred_fallthru
          _
        // Predicated region
        $region29: #{tpu_custom_call.1} parent=11 // pred_check
          %p333 = pneg %p197
        $region30: #{tpu_custom_call.1} parent=11 // pred_check_branch
          %335 = sbr.rel (%p333) target = $region32
        $region31: #{tpu_custom_call.1} parent=11 // pred_region
          %s337 = ssub.s32 1024, 1024
          %338 = vsyncadd [#allocation13], %s337
          %s339 = sshll.u32 [#allocation14], 4
          %s340 = int_to_ptr.vmem [resolvable:$true] %s339
          %345 = dma.hbm_to_vmem [thread:$0]  %s6, 1024, %s340, [#allocation13], 128, 128, 8
        $region32: #{tpu_custom_call.1} parent=11 // pred_fallthru
          _
        // Predicated region
        $region33: #{tpu_custom_call.1} parent=11 // pred_check
          %p346 = pneg %p218
        $region34: #{tpu_custom_call.1} parent=11 // pred_check_branch
          %348 = sbr.rel (%p346) target = $region36
        $region35: #{tpu_custom_call.1} parent=11 // pred_region
          _
        $region36: #{tpu_custom_call.1} parent=11 // pred_fallthru
          _
        // Predicated region
        $region37: #{tpu_custom_call.1} parent=11 // pred_check
          %p349 = pneg %p239
        $region38: #{tpu_custom_call.1} parent=11 // pred_check_branch
          %351 = sbr.rel (%p349) target = $region40
        $region39: #{tpu_custom_call.1} parent=11 // pred_region
          _
        $region40: #{tpu_custom_call.1} parent=11 // pred_fallthru
          _
        // Predicated region
        $region41: #{tpu_custom_call.1} parent=11 // pred_check
          %p352 = pneg %p260
        $region42: #{tpu_custom_call.1} parent=11 // pred_check_branch
          %354 = sbr.rel (%p352) target = $region44
        $region43: #{tpu_custom_call.1} parent=11 // pred_region
          _
        $region44: #{tpu_custom_call.1} parent=11 // pred_fallthru
          _
      $region12: #{tpu_custom_call.1} parent=5 // pred_fallthru
        _
      %p355 = scmp.lt.s32.totalorder %s26, 4
      // Predicated region
      $region45: #{tpu_custom_call.1} parent=5 // pred_check
        %p356 = pneg %p355
      $region46: #{tpu_custom_call.1} parent=5 // pred_check_branch
        %358 = sbr.rel (%p356) target = $region48
      $region47: #{tpu_custom_call.1} parent=5 // pred_region
        // Predicated region
        $region49: #{tpu_custom_call.1} parent=47 // pred_check
          %p359 = pneg %p60
        $region50: #{tpu_custom_call.1} parent=47 // pred_check_branch
          %361 = sbr.rel (%p359) target = $region52
        $region51: #{tpu_custom_call.1} parent=47 // pred_region
          %s362 = sand.u32 %s50, 1
          %s363 = scalar_lea.sflag [#allocation7], %s362
          %s364 = sand.u32 %s50, 1
          %s365 = smul.addr %s364, 8
          %s366 = scalar_lea.vmem [#allocation6], %s365
          %s368 = ssub.s32 128, 128
          %369 = vsyncadd %s363, %s368
          %s370 = smul.addr %s33, 2
          %s371 = sadd.s32 %s34, %s370
          %s372 = smul.addr %s371, 128
          %s373 = scalar_lea.hbm %s0, %s372
          %s375 = sshll.u32 %s366, 4
          %s376 = int_to_ptr.vmem [resolvable:$true] %s375
          %378 = dma.hbm_to_vmem [thread:$0]  %s373, 128, %s376, %s363
        $region52: #{tpu_custom_call.1} parent=47 // pred_fallthru
          _
        // Predicated region
        $region53: #{tpu_custom_call.1} parent=47 // pred_check
          %p379 = pneg %p86
        $region54: #{tpu_custom_call.1} parent=47 // pred_check_branch
          %381 = sbr.rel (%p379) target = $region56
        $region55: #{tpu_custom_call.1} parent=47 // pred_region
          %s382 = sand.u32 %s26, 1
          %s383 = scalar_lea.sflag [#allocation10], %s382
          %s384 = sand.u32 %s76, 1
          %s385 = smul.addr %s384, 8
          %s386 = scalar_lea.vmem [#allocation9], %s385
          %s388 = ssub.s32 128, 128
          %389 = vsyncadd %s383, %s388
          %s390 = smul.addr %s33, 128
          %s391 = scalar_lea.hbm %s1, %s390
          %s393 = sshll.u32 %s386, 4
          %s394 = int_to_ptr.vmem [resolvable:$true] %s393
          %396 = dma.hbm_to_vmem [thread:$0]  %s391, 128, %s394, %s383
        $region56: #{tpu_custom_call.1} parent=47 // pred_fallthru
          _
      $region48: #{tpu_custom_call.1} parent=5 // pred_fallthru
        _
      %p397 = scmp.le.s32.totalorder 1, %s26
      %p398 = scmp.lt.s32.totalorder %s26, 5
      %p399 = pnand %p397, %p398
      %p400 = pneg %p399
      // Predicated region
      $region57: #{tpu_custom_call.1} parent=5 // pred_check
        _
      $region58: #{tpu_custom_call.1} parent=5 // pred_check_branch
        %402 = sbr.rel (%p399) target = $region60
      $region59: #{tpu_custom_call.1} parent=5 // pred_region
        %s403 = ssub.s32 %s26, 1
        %s404 = sand.u32 %s53, 1
        %s405 = scalar_lea.sflag [#allocation7], %s404
        %s406 = sand.u32 %s53, 1
        %s407 = smul.addr %s406, 8
        %s408 = scalar_lea.vmem [#allocation6], %s407
        // Predicated region
        $region61: #{tpu_custom_call.1} parent=59 // pred_check
          %p409 = pneg %p66
        $region62: #{tpu_custom_call.1} parent=59 // pred_check_branch
          %411 = sbr.rel (%p409) target = $region64
        $region63: #{tpu_custom_call.1} parent=59 // pred_region
          %412 = dma.done %s405, 128
        $region64: #{tpu_custom_call.1} parent=59 // pred_fallthru
          _
        %s413 = sand.u32 %s31, 1
        %s414 = scalar_lea.sflag [#allocation10], %s413
        %s415 = sand.u32 %s79, 1
        %s416 = smul.addr %s415, 8
        %s417 = scalar_lea.vmem [#allocation9], %s416
        // Predicated region
        $region65: #{tpu_custom_call.1} parent=59 // pred_check
          %p418 = pneg %p92
        $region66: #{tpu_custom_call.1} parent=59 // pred_check_branch
          %420 = sbr.rel (%p418) target = $region68
        $region67: #{tpu_custom_call.1} parent=59 // pred_region
          %421 = dma.done %s414, 128
        $region68: #{tpu_custom_call.1} parent=59 // pred_fallthru
          _
        // Predicated region
        $region69: #{tpu_custom_call.1} parent=59 // pred_check
          %p422 = pneg %p113
        $region70: #{tpu_custom_call.1} parent=59 // pred_check_branch
          %424 = sbr.rel (%p422) target = $region72
        $region71: #{tpu_custom_call.1} parent=59 // pred_region
          %425 = dma.done [#allocation10], 1024
        $region72: #{tpu_custom_call.1} parent=59 // pred_fallthru
          _
        // Predicated region
        $region73: #{tpu_custom_call.1} parent=59 // pred_check
          %p426 = pneg %p155
        $region74: #{tpu_custom_call.1} parent=59 // pred_check_branch
          %428 = sbr.rel (%p426) target = $region76
        $region75: #{tpu_custom_call.1} parent=59 // pred_region
          %429 = dma.done [#allocation13], 2048
        $region76: #{tpu_custom_call.1} parent=59 // pred_fallthru
          _
        // Predicated region
        $region77: #{tpu_custom_call.1} parent=59 // pred_check
          %p430 = pneg %p197
        $region78: #{tpu_custom_call.1} parent=59 // pred_check_branch
          %432 = sbr.rel (%p430) target = $region80
        $region79: #{tpu_custom_call.1} parent=59 // pred_region
          %433 = dma.done [#allocation13], 1024
        $region80: #{tpu_custom_call.1} parent=59 // pred_fallthru
          _
        %s434 = sand.u32 %s53, 1
        %s435 = scalar_lea.sflag [#allocation7], %s434
        %s436 = sand.u32 %s53, 1
        %s437 = smul.addr %s436, 8
        %s438 = scalar_lea.vmem [#allocation6], %s437
        %p439 = pneg %p66
        %p440 = pneg %p63
        %s441 = sand.u32 %s31, 1
        %s442 = scalar_lea.sflag [#allocation10], %s441
        %s443 = sand.u32 %s79, 1
        %s444 = smul.addr %s443, 8
        %s445 = scalar_lea.vmem [#allocation9], %s444
        %p446 = pneg %p92
        %p447 = pneg %p89
        %p448 = pneg %p113
        %p449 = pneg %p110
        %p450 = pneg %p134
        %p451 = pneg %p131
        %p452 = pneg %p155
        %p453 = pneg %p152
        %p454 = pneg %p176
        %p455 = pneg %p173
        %p456 = pneg %p197
        %p457 = pneg %p194
        %p458 = pneg %p218
        %p459 = pneg %p215
        %p460 = pneg %p239
        %p461 = pneg %p236
        %p462 = pneg %p260
        %p463 = pneg %p257
        %p464 = pneg %p286
        %p465 = pneg %p283
        %s466 = sand.u32 %s273, 1
        %s467 = scalar_lea.sflag [#allocation8], %s466
        %s468 = sand.u32 %s273, 1
        %s469 = smul.addr %s468, 8
        %s470 = scalar_lea.vmem [#allocation15], %s469
        %p471 = scmp.eq.s32.totalorder %s36, 0
        // Predicated region
        $region81: #{tpu_custom_call.1} parent=59 // pred_check
          %p472 = pneg %p471
        $region82: #{tpu_custom_call.1} parent=59 // pred_check_branch
          %474 = sbr.rel (%p472) target = $region84
        $region83: #{tpu_custom_call.1} parent=59 // pred_region
          %v475 = vld [vmem:[%s417] sm:$0xff]
          %v476 = vld [vmem:[#allocation11] sm:$0xff]
          %v477 = vld [vmem:[#allocation11 + $0x8] sm:$0xff]
          %v478 = vld [vmem:[#allocation11 + $0x10] sm:$0xff]
          %v479 = vld [vmem:[#allocation11 + $0x18] sm:$0xff]
          %v480 = vld [vmem:[#allocation11 + $0x20] sm:$0xff]
          %v481 = vld [vmem:[#allocation11 + $0x28] sm:$0xff]
          %v482 = vld [vmem:[#allocation11 + $0x30] sm:$0xff]
          %v483 = vld [vmem:[#allocation11 + $0x38] sm:$0xff]
          %v484 = vld [vmem:[%s3] sm:$0x1]
          %v485 = vld [vmem:[%s3 + $0x1] sm:$0x1]
          %v488 = vlaneseq
          %v489 = vshrl.u32 %v488, 7
          %v490 = vsub.s32 0, %v489
          %v491 = vrot.slane %v484, %v490
          %v492 = vlaneseq
          %v493 = vshrl.u32 %v492, 7
          %v494 = vsub.s32 0, %v493
          %v495 = vrot.slane %v485, %v494
          %vm498 = vcmask 261120
          %v500 = vsel %vm498, %v475, 0
          %502 = vmatprep.subr.mxu0 0.0
          %503 = vmatpush1.msra.mxu0 0.0
          %504 = vmatprep.subr.mxu0 0.0
          %505 = vmatpush1.msra.mxu0 0.0
          %506 = vmatprep.subr.mxu0 0.0
          %507 = vmatpush1.msra.mxu0 0.0
          %508 = vmatprep.subr.mxu0 0.0
          %509 = vmatpush1.msra.mxu0 0.0
          %510 = vmatprep.subr.mxu0 0.0
          %511 = vmatpush1.msra.mxu0 0.0
          %512 = vmatprep.subr.mxu0 0.0
          %513 = vmatpush1.msra.mxu0 0.0
          %514 = vmatprep.subr.mxu0 0.0
          %515 = vmatpush1.msra.mxu0 0.0
          %516 = vmatprep.subr.mxu0 0.0
          %517 = vmatpush1.msra.mxu0 0.0
          %518 = vmatprep.subr.mxu0 0.0
          %519 = vmatpush1.msra.mxu0 0.0
          %520 = vmatprep.subr.mxu0 0.0
          %521 = vmatpush1.msra.mxu0 0.0
          %522 = vmatprep.subr.mxu0 0.0
          %523 = vmatpush1.msra.mxu0 0.0
          %524 = vmatprep.subr.mxu0 0.0
          %525 = vmatpush1.msra.mxu0 0.0
          %526 = vmatprep.subr.mxu0 0.0
          %527 = vmatpush1.msra.mxu0 %v479
          %528 = vmatprep.subr.mxu0 0.0
          %529 = vmatpush1.msra.mxu0 %v478
          %530 = vmatprep.subr.mxu0 0.0
          %531 = vmatpush1.msra.mxu0 %v477
          %532 = vmatprep.subr.mxu0 0.0
          %533 = vmatpush1.msra.mxu0 %v476
          %534 = vmatprep.subr.mxu0 0.0
          %535 = vmatpush2.msra.mxu0 0.0
          %536 = vmatprep.subr.mxu0 0.0
          %537 = vmatpush2.msra.mxu0 0.0
          %538 = vmatprep.subr.mxu0 0.0
          %539 = vmatpush2.msra.mxu0 0.0
          %540 = vmatprep.subr.mxu0 0.0
          %541 = vmatpush2.msra.mxu0 0.0
          %542 = vmatprep.subr.mxu0 0.0
          %543 = vmatpush2.msra.mxu0 0.0
          %544 = vmatprep.subr.mxu0 0.0
          %545 = vmatpush2.msra.mxu0 0.0
          %546 = vmatprep.subr.mxu0 0.0
          %547 = vmatpush2.msra.mxu0 0.0
          %548 = vmatprep.subr.mxu0 0.0
          %549 = vmatpush2.msra.mxu0 0.0
          %550 = vmatprep.subr.mxu0 0.0
          %551 = vmatpush2.msra.mxu0 0.0
          %552 = vmatprep.subr.mxu0 0.0
          %553 = vmatpush2.msra.mxu0 0.0
          %554 = vmatprep.subr.mxu0 0.0
          %555 = vmatpush2.msra.mxu0 0.0
          %556 = vmatprep.subr.mxu0 0.0
          %557 = vmatpush2.msra.mxu0 0.0
          %558 = vmatprep.subr.mxu0 0.0
          %559 = vmatpush2.msra.mxu0 0.0
          %560 = vmatprep.subr.mxu0 0.0
          %561 = vmatpush2.msra.mxu0 0.0
          %562 = vmatprep.subr.mxu0 0.0
          %563 = vmatpush2.msra.mxu0 0.0
          %564 = vmatprep.subr.mxu0 0.0
          %565 = vmatpush2.msra.mxu0 0.0
          %566 = vmatprep.mubr.f32.mxu0 0.0
          %567 = vmatmul.mubr.f32.gmra.mxu0 %v500
          %v568 = vpop.f32.mrf.mxu0
          %v569 = vadd.f32 %v491, %v568
          %v570 = vpop.f32.mrf.mxu0
          %571 = vdwg.mxu0
          %572 = vmatprep.subr.mxu0 0.0
          %573 = vmatpush1.msra.mxu0 0.0
          %574 = vmatprep.subr.mxu0 0.0
          %575 = vmatpush1.msra.mxu0 0.0
          %576 = vmatprep.subr.mxu0 0.0
          %577 = vmatpush1.msra.mxu0 0.0
          %578 = vmatprep.subr.mxu0 0.0
          %579 = vmatpush1.msra.mxu0 0.0
          %580 = vmatprep.subr.mxu0 0.0
          %581 = vmatpush1.msra.mxu0 0.0
          %582 = vmatprep.subr.mxu0 0.0
          %583 = vmatpush1.msra.mxu0 0.0
          %584 = vmatprep.subr.mxu0 0.0
          %585 = vmatpush1.msra.mxu0 0.0
          %586 = vmatprep.subr.mxu0 0.0
          %587 = vmatpush1.msra.mxu0 0.0
          %588 = vmatprep.subr.mxu0 0.0
          %589 = vmatpush1.msra.mxu0 0.0
          %590 = vmatprep.subr.mxu0 0.0
          %591 = vmatpush1.msra.mxu0 0.0
          %592 = vmatprep.subr.mxu0 0.0
          %593 = vmatpush1.msra.mxu0 0.0
          %594 = vmatprep.subr.mxu0 0.0
          %595 = vmatpush1.msra.mxu0 0.0
          %596 = vmatprep.subr.mxu0 0.0
          %597 = vmatpush1.msra.mxu0 %v483
          %598 = vmatprep.subr.mxu0 0.0
          %599 = vmatpush1.msra.mxu0 %v482
          %600 = vmatprep.subr.mxu0 0.0
          %601 = vmatpush1.msra.mxu0 %v481
          %602 = vmatprep.subr.mxu0 0.0
          %603 = vmatpush1.msra.mxu0 %v480
          %604 = vmatprep.subr.mxu0 0.0
          %605 = vmatpush2.msra.mxu0 0.0
          %606 = vmatprep.subr.mxu0 0.0
          %607 = vmatpush2.msra.mxu0 0.0
          %608 = vmatprep.subr.mxu0 0.0
          %609 = vmatpush2.msra.mxu0 0.0
          %610 = vmatprep.subr.mxu0 0.0
          %611 = vmatpush2.msra.mxu0 0.0
          %612 = vmatprep.subr.mxu0 0.0
          %613 = vmatpush2.msra.mxu0 0.0
          %614 = vmatprep.subr.mxu0 0.0
          %615 = vmatpush2.msra.mxu0 0.0
          %616 = vmatprep.subr.mxu0 0.0
          %617 = vmatpush2.msra.mxu0 0.0
          %618 = vmatprep.subr.mxu0 0.0
          %619 = vmatpush2.msra.mxu0 0.0
          %620 = vmatprep.subr.mxu0 0.0
          %621 = vmatpush2.msra.mxu0 0.0
          %622 = vmatprep.subr.mxu0 0.0
          %623 = vmatpush2.msra.mxu0 0.0
          %624 = vmatprep.subr.mxu0 0.0
          %625 = vmatpush2.msra.mxu0 0.0
          %626 = vmatprep.subr.mxu0 0.0
          %627 = vmatpush2.msra.mxu0 0.0
          %628 = vmatprep.subr.mxu0 0.0
          %629 = vmatpush2.msra.mxu0 0.0
          %630 = vmatprep.subr.mxu0 0.0
          %631 = vmatpush2.msra.mxu0 0.0
          %632 = vmatprep.subr.mxu0 0.0
          %633 = vmatpush2.msra.mxu0 0.0
          %634 = vmatprep.subr.mxu0 0.0
          %635 = vmatpush2.msra.mxu0 0.0
          %636 = vmatprep.mubr.f32.mxu0 0.0
          %637 = vmatmul.mubr.f32.gmra.mxu0 %v500
          %v638 = vpop.f32.mrf.mxu0
          %v639 = vadd.f32 %v495, %v638
          %v640 = vpop.f32.mrf.mxu0
          %641 = vdwg.mxu0
          %642 = vst.msk [vmem:[#allocation2] sm:$0xff] %vm498, %v569
          %643 = vst.msk [vmem:[#allocation2 + $0x8] sm:$0xff] %vm498, %v639
          %vm644 = vcmask 7168
          %645 = vst.msk [vmem:[#allocation3] sm:$0xff] %vm644, -inf
          %646 = vst.msk [vmem:[#allocation3 + $0x8] sm:$0xff] %vm644, -inf
          %647 = vst.msk [vmem:[#allocation4] sm:$0xff] %vm644, 0.0
          %648 = vst.msk [vmem:[#allocation4 + $0x8] sm:$0xff] %vm644, 0.0
          %649 = vst.msk [vmem:[#allocation5] sm:$0xff] %vm498, 0.0
          %650 = vst.msk [vmem:[#allocation5 + $0x8] sm:$0xff] %vm498, 0.0
        $region84: #{tpu_custom_call.1} parent=59 // pred_fallthru
          _
        %v651 = vld [vmem:[%s408] sm:$0xff]
        %v652 = vld [vmem:[#allocation12] sm:$0xff]
        %v653 = vld [vmem:[#allocation12 + $0x8] sm:$0xff]
        %v654 = vld [vmem:[#allocation12 + $0x10] sm:$0xff]
        %v655 = vld [vmem:[#allocation12 + $0x18] sm:$0xff]
        %v656 = vld [vmem:[#allocation12 + $0x20] sm:$0xff]
        %v657 = vld [vmem:[#allocation12 + $0x28] sm:$0xff]
        %v658 = vld [vmem:[#allocation12 + $0x30] sm:$0xff]
        %v659 = vld [vmem:[#allocation12 + $0x38] sm:$0xff]
        %v660 = vld [vmem:[#allocation12 + $0x40] sm:$0xff]
        %v661 = vld [vmem:[#allocation12 + $0x48] sm:$0xff]
        %v662 = vld [vmem:[#allocation12 + $0x50] sm:$0xff]
        %v663 = vld [vmem:[#allocation12 + $0x58] sm:$0xff]
        %v664 = vld [vmem:[#allocation12 + $0x60] sm:$0xff]
        %v665 = vld [vmem:[#allocation12 + $0x68] sm:$0xff]
        %v666 = vld [vmem:[#allocation12 + $0x70] sm:$0xff]
        %v667 = vld [vmem:[#allocation12 + $0x78] sm:$0xff]
        %v668 = vld [vmem:[%s5] sm:$0x1]
        %v669 = vld [vmem:[%s5 + $0x1] sm:$0x1]
        %v670 = vld [vmem:[%s5 + $0x2] sm:$0x1]
        %v671 = vld [vmem:[%s5 + $0x3] sm:$0x1]
        %v676 = vlaneseq
        %v677 = vshrl.u32 %v676, 7
        %v678 = vsub.s32 0, %v677
        %v679 = vrot.slane %v668, %v678
        %v680 = vlaneseq
        %v681 = vshrl.u32 %v680, 7
        %v682 = vsub.s32 0, %v681
        %v683 = vrot.slane %v669, %v682
        %v684 = vlaneseq
        %v685 = vshrl.u32 %v684, 7
        %v686 = vsub.s32 0, %v685
        %v687 = vrot.slane %v670, %v686
        %v688 = vlaneseq
        %v689 = vshrl.u32 %v688, 7
        %v690 = vsub.s32 0, %v689
        %v691 = vrot.slane %v671, %v690
        %vm696 = vcmask 261120
        %v698 = vsel %vm696, %v651, 0
        %700 = vmatprep.subr.mxu0 0.0
        %701 = vmatpush1.msra.mxu0 0.0
        %702 = vmatprep.subr.mxu0 0.0
        %703 = vmatpush1.msra.mxu0 0.0
        %704 = vmatprep.subr.mxu0 0.0
        %705 = vmatpush1.msra.mxu0 0.0
        %706 = vmatprep.subr.mxu0 0.0
        %707 = vmatpush1.msra.mxu0 0.0
        %708 = vmatprep.subr.mxu0 0.0
        %709 = vmatpush1.msra.mxu0 0.0
        %710 = vmatprep.subr.mxu0 0.0
        %711 = vmatpush1.msra.mxu0 0.0
        %712 = vmatprep.subr.mxu0 0.0
        %713 = vmatpush1.msra.mxu0 0.0
        %714 = vmatprep.subr.mxu0 0.0
        %715 = vmatpush1.msra.mxu0 0.0
        %716 = vmatprep.subr.mxu0 0.0
        %717 = vmatpush1.msra.mxu0 0.0
        %718 = vmatprep.subr.mxu0 0.0
        %719 = vmatpush1.msra.mxu0 0.0
        %720 = vmatprep.subr.mxu0 0.0
        %721 = vmatpush1.msra.mxu0 0.0
        %722 = vmatprep.subr.mxu0 0.0
        %723 = vmatpush1.msra.mxu0 0.0
        %724 = vmatprep.subr.mxu0 0.0
        %725 = vmatpush1.msra.mxu0 %v655
        %726 = vmatprep.subr.mxu0 0.0
        %727 = vmatpush1.msra.mxu0 %v654
        %728 = vmatprep.subr.mxu0 0.0
        %729 = vmatpush1.msra.mxu0 %v653
        %730 = vmatprep.subr.mxu0 0.0
        %731 = vmatpush1.msra.mxu0 %v652
        %732 = vmatprep.subr.mxu0 0.0
        %733 = vmatpush2.msra.mxu0 0.0
        %734 = vmatprep.subr.mxu0 0.0
        %735 = vmatpush2.msra.mxu0 0.0
        %736 = vmatprep.subr.mxu0 0.0
        %737 = vmatpush2.msra.mxu0 0.0
        %738 = vmatprep.subr.mxu0 0.0
        %739 = vmatpush2.msra.mxu0 0.0
        %740 = vmatprep.subr.mxu0 0.0
        %741 = vmatpush2.msra.mxu0 0.0
        %742 = vmatprep.subr.mxu0 0.0
        %743 = vmatpush2.msra.mxu0 0.0
        %744 = vmatprep.subr.mxu0 0.0
        %745 = vmatpush2.msra.mxu0 0.0
        %746 = vmatprep.subr.mxu0 0.0
        %747 = vmatpush2.msra.mxu0 0.0
        %748 = vmatprep.subr.mxu0 0.0
        %749 = vmatpush2.msra.mxu0 0.0
        %750 = vmatprep.subr.mxu0 0.0
        %751 = vmatpush2.msra.mxu0 0.0
        %752 = vmatprep.subr.mxu0 0.0
        %753 = vmatpush2.msra.mxu0 0.0
        %754 = vmatprep.subr.mxu0 0.0
        %755 = vmatpush2.msra.mxu0 0.0
        %756 = vmatprep.subr.mxu0 0.0
        %757 = vmatpush2.msra.mxu0 0.0
        %758 = vmatprep.subr.mxu0 0.0
        %759 = vmatpush2.msra.mxu0 0.0
        %760 = vmatprep.subr.mxu0 0.0
        %761 = vmatpush2.msra.mxu0 0.0
        %762 = vmatprep.subr.mxu0 0.0
        %763 = vmatpush2.msra.mxu0 0.0
        %764 = vmatprep.mubr.f32.mxu0 0.0
        %765 = vmatmul.mubr.f32.gmra.mxu0 %v698
        %v766 = vpop.f32.mrf.mxu0
        %v767 = vadd.f32 %v679, %v766
        %v768 = vpop.f32.mrf.mxu0
        %769 = vdwg.mxu0
        %770 = vmatprep.subr.mxu0 0.0
        %771 = vmatpush1.msra.mxu0 0.0
        %772 = vmatprep.subr.mxu0 0.0
        %773 = vmatpush1.msra.mxu0 0.0
        %774 = vmatprep.subr.mxu0 0.0
        %775 = vmatpush1.msra.mxu0 0.0
        %776 = vmatprep.subr.mxu0 0.0
        %777 = vmatpush1.msra.mxu0 0.0
        %778 = vmatprep.subr.mxu0 0.0
        %779 = vmatpush1.msra.mxu0 0.0
        %780 = vmatprep.subr.mxu0 0.0
        %781 = vmatpush1.msra.mxu0 0.0
        %782 = vmatprep.subr.mxu0 0.0
        %783 = vmatpush1.msra.mxu0 0.0
        %784 = vmatprep.subr.mxu0 0.0
        %785 = vmatpush1.msra.mxu0 0.0
        %786 = vmatprep.subr.mxu0 0.0
        %787 = vmatpush1.msra.mxu0 0.0
        %788 = vmatprep.subr.mxu0 0.0
        %789 = vmatpush1.msra.mxu0 0.0
        %790 = vmatprep.subr.mxu0 0.0
        %791 = vmatpush1.msra.mxu0 0.0
        %792 = vmatprep.subr.mxu0 0.0
        %793 = vmatpush1.msra.mxu0 0.0
        %794 = vmatprep.subr.mxu0 0.0
        %795 = vmatpush1.msra.mxu0 %v659
        %796 = vmatprep.subr.mxu0 0.0
        %797 = vmatpush1.msra.mxu0 %v658
        %798 = vmatprep.subr.mxu0 0.0
        %799 = vmatpush1.msra.mxu0 %v657
        %800 = vmatprep.subr.mxu0 0.0
        %801 = vmatpush1.msra.mxu0 %v656
        %802 = vmatprep.subr.mxu0 0.0
        %803 = vmatpush2.msra.mxu0 0.0
        %804 = vmatprep.subr.mxu0 0.0
        %805 = vmatpush2.msra.mxu0 0.0
        %806 = vmatprep.subr.mxu0 0.0
        %807 = vmatpush2.msra.mxu0 0.0
        %808 = vmatprep.subr.mxu0 0.0
        %809 = vmatpush2.msra.mxu0 0.0
        %810 = vmatprep.subr.mxu0 0.0
        %811 = vmatpush2.msra.mxu0 0.0
        %812 = vmatprep.subr.mxu0 0.0
        %813 = vmatpush2.msra.mxu0 0.0
        %814 = vmatprep.subr.mxu0 0.0
        %815 = vmatpush2.msra.mxu0 0.0
        %816 = vmatprep.subr.mxu0 0.0
        %817 = vmatpush2.msra.mxu0 0.0
        %818 = vmatprep.subr.mxu0 0.0
        %819 = vmatpush2.msra.mxu0 0.0
        %820 = vmatprep.subr.mxu0 0.0
        %821 = vmatpush2.msra.mxu0 0.0
        %822 = vmatprep.subr.mxu0 0.0
        %823 = vmatpush2.msra.mxu0 0.0
        %824 = vmatprep.subr.mxu0 0.0
        %825 = vmatpush2.msra.mxu0 0.0
        %826 = vmatprep.subr.mxu0 0.0
        %827 = vmatpush2.msra.mxu0 0.0
        %828 = vmatprep.subr.mxu0 0.0
        %829 = vmatpush2.msra.mxu0 0.0
        %830 = vmatprep.subr.mxu0 0.0
        %831 = vmatpush2.msra.mxu0 0.0
        %832 = vmatprep.subr.mxu0 0.0
        %833 = vmatpush2.msra.mxu0 0.0
        %834 = vmatprep.mubr.f32.mxu0 0.0
        %835 = vmatmul.mubr.f32.gmra.mxu0 %v698
        %v836 = vpop.f32.mrf.mxu0
        %v837 = vadd.f32 %v683, %v836
        %v838 = vpop.f32.mrf.mxu0
        %839 = vdwg.mxu0
        %840 = vmatprep.subr.mxu0 0.0
        %841 = vmatpush1.msra.mxu0 0.0
        %842 = vmatprep.subr.mxu0 0.0
        %843 = vmatpush1.msra.mxu0 0.0
        %844 = vmatprep.subr.mxu0 0.0
        %845 = vmatpush1.msra.mxu0 0.0
        %846 = vmatprep.subr.mxu0 0.0
        %847 = vmatpush1.msra.mxu0 0.0
        %848 = vmatprep.subr.mxu0 0.0
        %849 = vmatpush1.msra.mxu0 0.0
        %850 = vmatprep.subr.mxu0 0.0
        %851 = vmatpush1.msra.mxu0 0.0
        %852 = vmatprep.subr.mxu0 0.0
        %853 = vmatpush1.msra.mxu0 0.0
        %854 = vmatprep.subr.mxu0 0.0
        %855 = vmatpush1.msra.mxu0 0.0
        %856 = vmatprep.subr.mxu0 0.0
        %857 = vmatpush1.msra.mxu0 0.0
        %858 = vmatprep.subr.mxu0 0.0
        %859 = vmatpush1.msra.mxu0 0.0
        %860 = vmatprep.subr.mxu0 0.0
        %861 = vmatpush1.msra.mxu0 0.0
        %862 = vmatprep.subr.mxu0 0.0
        %863 = vmatpush1.msra.mxu0 0.0
        %864 = vmatprep.subr.mxu0 0.0
        %865 = vmatpush1.msra.mxu0 %v663
        %866 = vmatprep.subr.mxu0 0.0
        %867 = vmatpush1.msra.mxu0 %v662
        %868 = vmatprep.subr.mxu0 0.0
        %869 = vmatpush1.msra.mxu0 %v661
        %870 = vmatprep.subr.mxu0 0.0
        %871 = vmatpush1.msra.mxu0 %v660
        %872 = vmatprep.subr.mxu0 0.0
        %873 = vmatpush2.msra.mxu0 0.0
        %874 = vmatprep.subr.mxu0 0.0
        %875 = vmatpush2.msra.mxu0 0.0
        %876 = vmatprep.subr.mxu0 0.0
        %877 = vmatpush2.msra.mxu0 0.0
        %878 = vmatprep.subr.mxu0 0.0
        %879 = vmatpush2.msra.mxu0 0.0
        %880 = vmatprep.subr.mxu0 0.0
        %881 = vmatpush2.msra.mxu0 0.0
        %882 = vmatprep.subr.mxu0 0.0
        %883 = vmatpush2.msra.mxu0 0.0
        %884 = vmatprep.subr.mxu0 0.0
        %885 = vmatpush2.msra.mxu0 0.0
        %886 = vmatprep.subr.mxu0 0.0
        %887 = vmatpush2.msra.mxu0 0.0
        %888 = vmatprep.subr.mxu0 0.0
        %889 = vmatpush2.msra.mxu0 0.0
        %890 = vmatprep.subr.mxu0 0.0
        %891 = vmatpush2.msra.mxu0 0.0
        %892 = vmatprep.subr.mxu0 0.0
        %893 = vmatpush2.msra.mxu0 0.0
        %894 = vmatprep.subr.mxu0 0.0
        %895 = vmatpush2.msra.mxu0 0.0
        %896 = vmatprep.subr.mxu0 0.0
        %897 = vmatpush2.msra.mxu0 0.0
        %898 = vmatprep.subr.mxu0 0.0
        %899 = vmatpush2.msra.mxu0 0.0
        %900 = vmatprep.subr.mxu0 0.0
        %901 = vmatpush2.msra.mxu0 0.0
        %902 = vmatprep.subr.mxu0 0.0
        %903 = vmatpush2.msra.mxu0 0.0
        %904 = vmatprep.mubr.f32.mxu0 0.0
        %905 = vmatmul.mubr.f32.gmra.mxu0 %v698
        %v906 = vpop.f32.mrf.mxu0
        %v907 = vadd.f32 %v687, %v906
        %v908 = vpop.f32.mrf.mxu0
        %909 = vdwg.mxu0
        %910 = vmatprep.subr.mxu0 0.0
        %911 = vmatpush1.msra.mxu0 0.0
        %912 = vmatprep.subr.mxu0 0.0
        %913 = vmatpush1.msra.mxu0 0.0
        %914 = vmatprep.subr.mxu0 0.0
        %915 = vmatpush1.msra.mxu0 0.0
        %916 = vmatprep.subr.mxu0 0.0
        %917 = vmatpush1.msra.mxu0 0.0
        %918 = vmatprep.subr.mxu0 0.0
        %919 = vmatpush1.msra.mxu0 0.0
        %920 = vmatprep.subr.mxu0 0.0
        %921 = vmatpush1.msra.mxu0 0.0
        %922 = vmatprep.subr.mxu0 0.0
        %923 = vmatpush1.msra.mxu0 0.0
        %924 = vmatprep.subr.mxu0 0.0
        %925 = vmatpush1.msra.mxu0 0.0
        %926 = vmatprep.subr.mxu0 0.0
        %927 = vmatpush1.msra.mxu0 0.0
        %928 = vmatprep.subr.mxu0 0.0
        %929 = vmatpush1.msra.mxu0 0.0
        %930 = vmatprep.subr.mxu0 0.0
        %931 = vmatpush1.msra.mxu0 0.0
        %932 = vmatprep.subr.mxu0 0.0
        %933 = vmatpush1.msra.mxu0 0.0
        %934 = vmatprep.subr.mxu0 0.0
        %935 = vmatpush1.msra.mxu0 %v667
        %936 = vmatprep.subr.mxu0 0.0
        %937 = vmatpush1.msra.mxu0 %v666
        %938 = vmatprep.subr.mxu0 0.0
        %939 = vmatpush1.msra.mxu0 %v665
        %940 = vmatprep.subr.mxu0 0.0
        %941 = vmatpush1.msra.mxu0 %v664
        %942 = vmatprep.subr.mxu0 0.0
        %943 = vmatpush2.msra.mxu0 0.0
        %944 = vmatprep.subr.mxu0 0.0
        %945 = vmatpush2.msra.mxu0 0.0
        %946 = vmatprep.subr.mxu0 0.0
        %947 = vmatpush2.msra.mxu0 0.0
        %948 = vmatprep.subr.mxu0 0.0
        %949 = vmatpush2.msra.mxu0 0.0
        %950 = vmatprep.subr.mxu0 0.0
        %951 = vmatpush2.msra.mxu0 0.0
        %952 = vmatprep.subr.mxu0 0.0
        %953 = vmatpush2.msra.mxu0 0.0
        %954 = vmatprep.subr.mxu0 0.0
        %955 = vmatpush2.msra.mxu0 0.0
        %956 = vmatprep.subr.mxu0 0.0
        %957 = vmatpush2.msra.mxu0 0.0
        %958 = vmatprep.subr.mxu0 0.0
        %959 = vmatpush2.msra.mxu0 0.0
        %960 = vmatprep.subr.mxu0 0.0
        %961 = vmatpush2.msra.mxu0 0.0
        %962 = vmatprep.subr.mxu0 0.0
        %963 = vmatpush2.msra.mxu0 0.0
        %964 = vmatprep.subr.mxu0 0.0
        %965 = vmatpush2.msra.mxu0 0.0
        %966 = vmatprep.subr.mxu0 0.0
        %967 = vmatpush2.msra.mxu0 0.0
        %968 = vmatprep.subr.mxu0 0.0
        %969 = vmatpush2.msra.mxu0 0.0
        %970 = vmatprep.subr.mxu0 0.0
        %971 = vmatpush2.msra.mxu0 0.0
        %972 = vmatprep.subr.mxu0 0.0
        %973 = vmatpush2.msra.mxu0 0.0
        %974 = vmatprep.mubr.f32.mxu0 0.0
        %975 = vmatmul.mubr.f32.gmra.mxu0 %v698
        %v976 = vpop.f32.mrf.mxu0
        %v977 = vadd.f32 %v691, %v976
        %v978 = vpop.f32.mrf.mxu0
        %979 = vdwg.mxu0
        %v980 = vld [vmem:[#allocation2] sm:$0xff]
        %v981 = vld [vmem:[#allocation2 + $0x8] sm:$0xff]
        %v983 = vsel %vm696, %v980, 0
        %v986 = vsel %vm696, %v767, 0
        %988 = vmatprep.subr.mxu0 0.0
        %989 = vmatpush1.xpose.msra.mxu0 0.0
        %990 = vmatprep.subr.mxu0 0.0
        %991 = vmatpush1.xpose.msra.mxu0 0.0
        %992 = vmatprep.subr.mxu0 0.0
        %993 = vmatpush1.xpose.msra.mxu0 0.0
        %994 = vmatprep.subr.mxu0 0.0
        %995 = vmatpush1.xpose.msra.mxu0 0.0
        %996 = vmatprep.subr.mxu0 0.0
        %997 = vmatpush1.xpose.msra.mxu0 0.0
        %998 = vmatprep.subr.mxu0 0.0
        %999 = vmatpush1.xpose.msra.mxu0 0.0
        %1000 = vmatprep.subr.mxu0 0.0
        %1001 = vmatpush1.xpose.msra.mxu0 0.0
        %1002 = vmatprep.subr.mxu0 0.0
        %1003 = vmatpush1.xpose.msra.mxu0 0.0
        %1004 = vmatprep.subr.mxu0 0.0
        %1005 = vmatpush1.xpose.msra.mxu0 0.0
        %1006 = vmatprep.subr.mxu0 0.0
        %1007 = vmatpush1.xpose.msra.mxu0 0.0
        %1008 = vmatprep.subr.mxu0 0.0
        %1009 = vmatpush1.xpose.msra.mxu0 0.0
        %1010 = vmatprep.subr.mxu0 0.0
        %1011 = vmatpush1.xpose.msra.mxu0 0.0
        %1012 = vmatprep.subr.mxu0 0.0
        %1013 = vmatpush1.xpose.msra.mxu0 0.0
        %1014 = vmatprep.subr.mxu0 0.0
        %1015 = vmatpush1.xpose.msra.mxu0 0.0
        %1016 = vmatprep.subr.mxu0 0.0
        %1017 = vmatpush1.xpose.msra.mxu0 0.0
        %1018 = vmatprep.subr.mxu0 0.0
        %1019 = vmatpush1.xpose.msra.mxu0 %v986
        %1020 = vmatprep.subr.mxu0 0.0
        %1021 = vmatpush2.xpose.msra.mxu0 0.0
        %1022 = vmatprep.subr.mxu0 0.0
        %1023 = vmatpush2.xpose.msra.mxu0 0.0
        %1024 = vmatprep.subr.mxu0 0.0
        %1025 = vmatpush2.xpose.msra.mxu0 0.0
        %1026 = vmatprep.subr.mxu0 0.0
        %1027 = vmatpush2.xpose.msra.mxu0 0.0
        %1028 = vmatprep.subr.mxu0 0.0
        %1029 = vmatpush2.xpose.msra.mxu0 0.0
        %1030 = vmatprep.subr.mxu0 0.0
        %1031 = vmatpush2.xpose.msra.mxu0 0.0
        %1032 = vmatprep.subr.mxu0 0.0
        %1033 = vmatpush2.xpose.msra.mxu0 0.0
        %1034 = vmatprep.subr.mxu0 0.0
        %1035 = vmatpush2.xpose.msra.mxu0 0.0
        %1036 = vmatprep.subr.mxu0 0.0
        %1037 = vmatpush2.xpose.msra.mxu0 0.0
        %1038 = vmatprep.subr.mxu0 0.0
        %1039 = vmatpush2.xpose.msra.mxu0 0.0
        %1040 = vmatprep.subr.mxu0 0.0
        %1041 = vmatpush2.xpose.msra.mxu0 0.0
        %1042 = vmatprep.subr.mxu0 0.0
        %1043 = vmatpush2.xpose.msra.mxu0 0.0
        %1044 = vmatprep.subr.mxu0 0.0
        %1045 = vmatpush2.xpose.msra.mxu0 0.0
        %1046 = vmatprep.subr.mxu0 0.0
        %1047 = vmatpush2.xpose.msra.mxu0 0.0
        %1048 = vmatprep.subr.mxu0 0.0
        %1049 = vmatpush2.xpose.msra.mxu0 0.0
        %1050 = vmatprep.subr.mxu0 0.0
        %1051 = vmatpush2.xpose.msra.mxu0 0.0
        %1052 = vmatprep.mubr.f32.mxu0 0.0
        %1053 = vmatmul.mubr.f32.gmra.mxu0 %v983
        %v1054 = vpop.f32.mrf.mxu0
        %v1055 = vadd.f32 0.0, %v1054
        %v1056 = vpop.f32.mrf.mxu0
        %1057 = vdwg.mxu0
        %v1059 = vsel %vm696, %v981, 0
        %v1062 = vsel %vm696, %v837, 0
        %1064 = vmatprep.subr.mxu0 0.0
        %1065 = vmatpush1.xpose.msra.mxu0 0.0
        %1066 = vmatprep.subr.mxu0 0.0
        %1067 = vmatpush1.xpose.msra.mxu0 0.0
        %1068 = vmatprep.subr.mxu0 0.0
        %1069 = vmatpush1.xpose.msra.mxu0 0.0
        %1070 = vmatprep.subr.mxu0 0.0
        %1071 = vmatpush1.xpose.msra.mxu0 0.0
        %1072 = vmatprep.subr.mxu0 0.0
        %1073 = vmatpush1.xpose.msra.mxu0 0.0
        %1074 = vmatprep.subr.mxu0 0.0
        %1075 = vmatpush1.xpose.msra.mxu0 0.0
        %1076 = vmatprep.subr.mxu0 0.0
        %1077 = vmatpush1.xpose.msra.mxu0 0.0
        %1078 = vmatprep.subr.mxu0 0.0
        %1079 = vmatpush1.xpose.msra.mxu0 0.0
        %1080 = vmatprep.subr.mxu0 0.0
        %1081 = vmatpush1.xpose.msra.mxu0 0.0
        %1082 = vmatprep.subr.mxu0 0.0
        %1083 = vmatpush1.xpose.msra.mxu0 0.0
        %1084 = vmatprep.subr.mxu0 0.0
        %1085 = vmatpush1.xpose.msra.mxu0 0.0
        %1086 = vmatprep.subr.mxu0 0.0
        %1087 = vmatpush1.xpose.msra.mxu0 0.0
        %1088 = vmatprep.subr.mxu0 0.0
        %1089 = vmatpush1.xpose.msra.mxu0 0.0
        %1090 = vmatprep.subr.mxu0 0.0
        %1091 = vmatpush1.xpose.msra.mxu0 0.0
        %1092 = vmatprep.subr.mxu0 0.0
        %1093 = vmatpush1.xpose.msra.mxu0 0.0
        %1094 = vmatprep.subr.mxu0 0.0
        %1095 = vmatpush1.xpose.msra.mxu0 %v1062
        %1096 = vmatprep.subr.mxu0 0.0
        %1097 = vmatpush2.xpose.msra.mxu0 0.0
        %1098 = vmatprep.subr.mxu0 0.0
        %1099 = vmatpush2.xpose.msra.mxu0 0.0
        %1100 = vmatprep.subr.mxu0 0.0
        %1101 = vmatpush2.xpose.msra.mxu0 0.0
        %1102 = vmatprep.subr.mxu0 0.0
        %1103 = vmatpush2.xpose.msra.mxu0 0.0
        %1104 = vmatprep.subr.mxu0 0.0
        %1105 = vmatpush2.xpose.msra.mxu0 0.0
        %1106 = vmatprep.subr.mxu0 0.0
        %1107 = vmatpush2.xpose.msra.mxu0 0.0
        %1108 = vmatprep.subr.mxu0 0.0
        %1109 = vmatpush2.xpose.msra.mxu0 0.0
        %1110 = vmatprep.subr.mxu0 0.0
        %1111 = vmatpush2.xpose.msra.mxu0 0.0
        %1112 = vmatprep.subr.mxu0 0.0
        %1113 = vmatpush2.xpose.msra.mxu0 0.0
        %1114 = vmatprep.subr.mxu0 0.0
        %1115 = vmatpush2.xpose.msra.mxu0 0.0
        %1116 = vmatprep.subr.mxu0 0.0
        %1117 = vmatpush2.xpose.msra.mxu0 0.0
        %1118 = vmatprep.subr.mxu0 0.0
        %1119 = vmatpush2.xpose.msra.mxu0 0.0
        %1120 = vmatprep.subr.mxu0 0.0
        %1121 = vmatpush2.xpose.msra.mxu0 0.0
        %1122 = vmatprep.subr.mxu0 0.0
        %1123 = vmatpush2.xpose.msra.mxu0 0.0
        %1124 = vmatprep.subr.mxu0 0.0
        %1125 = vmatpush2.xpose.msra.mxu0 0.0
        %1126 = vmatprep.subr.mxu0 0.0
        %1127 = vmatpush2.xpose.msra.mxu0 0.0
        %1128 = vmatprep.mubr.f32.mxu0 0.0
        %1129 = vmatmul.mubr.f32.gmra.mxu0 %v1059
        %v1130 = vpop.f32.mrf.mxu0
        %v1131 = vadd.f32 0.0, %v1130
        %v1132 = vpop.f32.mrf.mxu0
        %1133 = vdwg.mxu0
        %v1134 = vld [vmem:[#allocation3] sm:$0xff]
        %v1135 = vld [vmem:[#allocation3 + $0x8] sm:$0xff]
        %vm1136 = vcmask 64512
        %v1137 = vsel %vm1136, %v1055, -inf
        %1138 = vmax.xlane.f32.xlu0 %v1137
        %v1139 = vpop.xlane.xlu0 %1138
        %v1140 = vsel %vm1136, %v1131, -inf
        %1141 = vmax.xlane.f32.xlu0 %v1140
        %v1142 = vpop.xlane.xlu0 %1141
        %v1143 = vmax.f32 %v1134, %v1139
        %v1144 = vmax.f32 %v1135, %v1142
        %v1145 = vsub.f32 %v1134, %v1143
        %v1146 = vsub.f32 %v1135, %v1144
        %v1147 = vmul.f32 %v1145, 1.442695
        %v1148 = vpow.pop %v1147
        %v1149 = vmul.f32 %v1146, 1.442695
        %v1150 = vpow.pop %v1149
        %1152 = vset.pattern.permute.xlu0 0
        %1153 = vperm.xlu0 %1152, %v1143
        %v1154 = vpop.permute.xlu0 %1153
        %1157 = vset.pattern.permute.xlu0 0
        %1158 = vperm.xlu0 %1157, %v1144
        %v1159 = vpop.permute.xlu0 %1158
        %v1161 = vsub.f32 %v1055, %v1154
        %v1162 = vsub.f32 %v1131, %v1159
        %v1163 = vmul.f32 %v1161, 1.442695
        %v1164 = vpow.pop %v1163
        %v1165 = vmul.f32 %v1162, 1.442695
        %v1166 = vpow.pop %v1165
        %v1167 = vld [vmem:[#allocation4] sm:$0xff]
        %v1168 = vld [vmem:[#allocation4 + $0x8] sm:$0xff]
        %v1169 = vmul.f32 %v1148, %v1167
        %v1170 = vmul.f32 %v1150, %v1168
        %v1171 = vsel %vm1136, %v1164, 0.0
        %1172 = vadd.xlane.f32.xlu0 %v1171
        %v1173 = vpop.xlane.xlu0 %1172
        %v1174 = vsel %vm1136, %v1166, 0.0
        %1175 = vadd.xlane.f32.xlu0 %v1174
        %v1176 = vpop.xlane.xlu0 %1175
        %v1177 = vadd.f32 %v1169, %v1173
        %v1178 = vadd.f32 %v1170, %v1176
        %vm1179 = vcmask 7168
        %1180 = vst.msk [vmem:[#allocation4] sm:$0xff] %vm1179, %v1177
        %1181 = vst.msk [vmem:[#allocation4 + $0x8] sm:$0xff] %vm1179, %v1178
        %v1182 = vld [vmem:[#allocation5] sm:$0xff]
        %v1183 = vld [vmem:[#allocation5 + $0x8] sm:$0xff]
        %1185 = vset.pattern.permute.xlu0 0
        %1186 = vperm.xlu0 %1185, %v1148
        %v1187 = vpop.permute.xlu0 %1186
        %1190 = vset.pattern.permute.xlu0 0
        %1191 = vperm.xlu0 %1190, %v1150
        %v1192 = vpop.permute.xlu0 %1191
        %v1194 = vmul.f32 %v1187, %v1182
        %v1195 = vmul.f32 %v1192, %v1183
        %v1197 = vsel %vm1136, %v1164, 0
        %1199 = vmatprep.subr.mxu0 0.0
        %1200 = vmatpush1.msra.mxu0 0.0
        %1201 = vmatprep.subr.mxu0 0.0
        %1202 = vmatpush1.msra.mxu0 0.0
        %1203 = vmatprep.subr.mxu0 0.0
        %1204 = vmatpush1.msra.mxu0 0.0
        %1205 = vmatprep.subr.mxu0 0.0
        %1206 = vmatpush1.msra.mxu0 0.0
        %1207 = vmatprep.subr.mxu0 0.0
        %1208 = vmatpush1.msra.mxu0 0.0
        %1209 = vmatprep.subr.mxu0 0.0
        %1210 = vmatpush1.msra.mxu0 0.0
        %1211 = vmatprep.subr.mxu0 0.0
        %1212 = vmatpush1.msra.mxu0 0.0
        %1213 = vmatprep.subr.mxu0 0.0
        %1214 = vmatpush1.msra.mxu0 0.0
        %1215 = vmatprep.subr.mxu0 0.0
        %1216 = vmatpush1.msra.mxu0 0.0
        %1217 = vmatprep.subr.mxu0 0.0
        %1218 = vmatpush1.msra.mxu0 0.0
        %1219 = vmatprep.subr.mxu0 0.0
        %1220 = vmatpush1.msra.mxu0 0.0
        %1221 = vmatprep.subr.mxu0 0.0
        %1222 = vmatpush1.msra.mxu0 0.0
        %1223 = vmatprep.subr.mxu0 0.0
        %1224 = vmatpush1.msra.mxu0 0.0
        %1225 = vmatprep.subr.mxu0 0.0
        %1226 = vmatpush1.msra.mxu0 0.0
        %1227 = vmatprep.subr.mxu0 0.0
        %1228 = vmatpush1.msra.mxu0 0.0
        %1229 = vmatprep.subr.mxu0 0.0
        %1230 = vmatpush1.msra.mxu0 %v907
        %1231 = vmatprep.subr.mxu0 0.0
        %1232 = vmatpush2.msra.mxu0 0.0
        %1233 = vmatprep.subr.mxu0 0.0
        %1234 = vmatpush2.msra.mxu0 0.0
        %1235 = vmatprep.subr.mxu0 0.0
        %1236 = vmatpush2.msra.mxu0 0.0
        %1237 = vmatprep.subr.mxu0 0.0
        %1238 = vmatpush2.msra.mxu0 0.0
        %1239 = vmatprep.subr.mxu0 0.0
        %1240 = vmatpush2.msra.mxu0 0.0
        %1241 = vmatprep.subr.mxu0 0.0
        %1242 = vmatpush2.msra.mxu0 0.0
        %1243 = vmatprep.subr.mxu0 0.0
        %1244 = vmatpush2.msra.mxu0 0.0
        %1245 = vmatprep.subr.mxu0 0.0
        %1246 = vmatpush2.msra.mxu0 0.0
        %1247 = vmatprep.subr.mxu0 0.0
        %1248 = vmatpush2.msra.mxu0 0.0
        %1249 = vmatprep.subr.mxu0 0.0
        %1250 = vmatpush2.msra.mxu0 0.0
        %1251 = vmatprep.subr.mxu0 0.0
        %1252 = vmatpush2.msra.mxu0 0.0
        %1253 = vmatprep.subr.mxu0 0.0
        %1254 = vmatpush2.msra.mxu0 0.0
        %1255 = vmatprep.subr.mxu0 0.0
        %1256 = vmatpush2.msra.mxu0 0.0
        %1257 = vmatprep.subr.mxu0 0.0
        %1258 = vmatpush2.msra.mxu0 0.0
        %1259 = vmatprep.subr.mxu0 0.0
        %1260 = vmatpush2.msra.mxu0 0.0
        %1261 = vmatprep.subr.mxu0 0.0
        %1262 = vmatpush2.msra.mxu0 0.0
        %1263 = vmatprep.mubr.f32.mxu0 0.0
        %1264 = vmatmul.mubr.f32.gmra.mxu0 %v1197
        %v1265 = vpop.f32.mrf.mxu0
        %v1266 = vadd.f32 0.0, %v1265
        %v1267 = vpop.f32.mrf.mxu0
        %1268 = vdwg.mxu0
        %v1270 = vsel %vm1136, %v1166, 0
        %1272 = vmatprep.subr.mxu0 0.0
        %1273 = vmatpush1.msra.mxu0 0.0
        %1274 = vmatprep.subr.mxu0 0.0
        %1275 = vmatpush1.msra.mxu0 0.0
        %1276 = vmatprep.subr.mxu0 0.0
        %1277 = vmatpush1.msra.mxu0 0.0
        %1278 = vmatprep.subr.mxu0 0.0
        %1279 = vmatpush1.msra.mxu0 0.0
        %1280 = vmatprep.subr.mxu0 0.0
        %1281 = vmatpush1.msra.mxu0 0.0
        %1282 = vmatprep.subr.mxu0 0.0
        %1283 = vmatpush1.msra.mxu0 0.0
        %1284 = vmatprep.subr.mxu0 0.0
        %1285 = vmatpush1.msra.mxu0 0.0
        %1286 = vmatprep.subr.mxu0 0.0
        %1287 = vmatpush1.msra.mxu0 0.0
        %1288 = vmatprep.subr.mxu0 0.0
        %1289 = vmatpush1.msra.mxu0 0.0
        %1290 = vmatprep.subr.mxu0 0.0
        %1291 = vmatpush1.msra.mxu0 0.0
        %1292 = vmatprep.subr.mxu0 0.0
        %1293 = vmatpush1.msra.mxu0 0.0
        %1294 = vmatprep.subr.mxu0 0.0
        %1295 = vmatpush1.msra.mxu0 0.0
        %1296 = vmatprep.subr.mxu0 0.0
        %1297 = vmatpush1.msra.mxu0 0.0
        %1298 = vmatprep.subr.mxu0 0.0
        %1299 = vmatpush1.msra.mxu0 0.0
        %1300 = vmatprep.subr.mxu0 0.0
        %1301 = vmatpush1.msra.mxu0 0.0
        %1302 = vmatprep.subr.mxu0 0.0
        %1303 = vmatpush1.msra.mxu0 %v977
        %1304 = vmatprep.subr.mxu0 0.0
        %1305 = vmatpush2.msra.mxu0 0.0
        %1306 = vmatprep.subr.mxu0 0.0
        %1307 = vmatpush2.msra.mxu0 0.0
        %1308 = vmatprep.subr.mxu0 0.0
        %1309 = vmatpush2.msra.mxu0 0.0
        %1310 = vmatprep.subr.mxu0 0.0
        %1311 = vmatpush2.msra.mxu0 0.0
        %1312 = vmatprep.subr.mxu0 0.0
        %1313 = vmatpush2.msra.mxu0 0.0
        %1314 = vmatprep.subr.mxu0 0.0
        %1315 = vmatpush2.msra.mxu0 0.0
        %1316 = vmatprep.subr.mxu0 0.0
        %1317 = vmatpush2.msra.mxu0 0.0
        %1318 = vmatprep.subr.mxu0 0.0
        %1319 = vmatpush2.msra.mxu0 0.0
        %1320 = vmatprep.subr.mxu0 0.0
        %1321 = vmatpush2.msra.mxu0 0.0
        %1322 = vmatprep.subr.mxu0 0.0
        %1323 = vmatpush2.msra.mxu0 0.0
        %1324 = vmatprep.subr.mxu0 0.0
        %1325 = vmatpush2.msra.mxu0 0.0
        %1326 = vmatprep.subr.mxu0 0.0
        %1327 = vmatpush2.msra.mxu0 0.0
        %1328 = vmatprep.subr.mxu0 0.0
        %1329 = vmatpush2.msra.mxu0 0.0
        %1330 = vmatprep.subr.mxu0 0.0
        %1331 = vmatpush2.msra.mxu0 0.0
        %1332 = vmatprep.subr.mxu0 0.0
        %1333 = vmatpush2.msra.mxu0 0.0
        %1334 = vmatprep.subr.mxu0 0.0
        %1335 = vmatpush2.msra.mxu0 0.0
        %1336 = vmatprep.mubr.f32.mxu0 0.0
        %1337 = vmatmul.mubr.f32.gmra.mxu0 %v1270
        %v1338 = vpop.f32.mrf.mxu0
        %v1339 = vadd.f32 0.0, %v1338
        %v1340 = vpop.f32.mrf.mxu0
        %1341 = vdwg.mxu0
        %v1342 = vadd.f32 %v1194, %v1266
        %v1343 = vadd.f32 %v1195, %v1339
        %1344 = vst.msk [vmem:[#allocation5] sm:$0xff] %vm696, %v1342
        %1345 = vst.msk [vmem:[#allocation5 + $0x8] sm:$0xff] %vm696, %v1343
        %1346 = vst.msk [vmem:[#allocation3] sm:$0xff] %vm1179, %v1143
        %1347 = vst.msk [vmem:[#allocation3 + $0x8] sm:$0xff] %vm1179, %v1144
        %p1348 = scmp.eq.s32.totalorder %s36, 1
        // Predicated region
        $region85: #{tpu_custom_call.1} parent=59 // pred_check
          %p1349 = pneg %p1348
        $region86: #{tpu_custom_call.1} parent=59 // pred_check_branch
          %1351 = sbr.rel (%p1349) target = $region88
        $region87: #{tpu_custom_call.1} parent=59 // pred_region
          %v1352 = vld [vmem:[#allocation5] sm:$0xff]
          %v1353 = vld [vmem:[#allocation5 + $0x8] sm:$0xff]
          %v1354 = vld [vmem:[#allocation4] sm:$0xff]
          %v1355 = vld [vmem:[#allocation4 + $0x8] sm:$0xff]
          %1357 = vset.pattern.permute.xlu0 0
          %1358 = vperm.xlu0 %1357, %v1354
          %v1359 = vpop.permute.xlu0 %1358
          %1362 = vset.pattern.permute.xlu0 0
          %1363 = vperm.xlu0 %1362, %v1355
          %v1364 = vpop.permute.xlu0 %1363
          %v1366 = vrcp.pop %v1359
          %v1367 = vmul.f32 %v1352, %v1366
          %v1368 = vrcp.pop %v1364
          %v1369 = vmul.f32 %v1353, %v1368
          %v1370 = vld [vmem:[#allocation14] sm:$0xff]
          %v1371 = vld [vmem:[#allocation14 + $0x8] sm:$0xff]
          %v1372 = vld [vmem:[#allocation14 + $0x10] sm:$0xff]
          %v1373 = vld [vmem:[#allocation14 + $0x18] sm:$0xff]
          %v1374 = vld [vmem:[#allocation14 + $0x20] sm:$0xff]
          %v1375 = vld [vmem:[#allocation14 + $0x28] sm:$0xff]
          %v1376 = vld [vmem:[#allocation14 + $0x30] sm:$0xff]
          %v1377 = vld [vmem:[#allocation14 + $0x38] sm:$0xff]
          %v1379 = vsel %vm696, %v1367, 0
          %1381 = vmatprep.subr.mxu0 0.0
          %1382 = vmatpush1.msra.mxu0 0.0
          %1383 = vmatprep.subr.mxu0 0.0
          %1384 = vmatpush1.msra.mxu0 0.0
          %1385 = vmatprep.subr.mxu0 0.0
          %1386 = vmatpush1.msra.mxu0 0.0
          %1387 = vmatprep.subr.mxu0 0.0
          %1388 = vmatpush1.msra.mxu0 0.0
          %1389 = vmatprep.subr.mxu0 0.0
          %1390 = vmatpush1.msra.mxu0 0.0
          %1391 = vmatprep.subr.mxu0 0.0
          %1392 = vmatpush1.msra.mxu0 0.0
          %1393 = vmatprep.subr.mxu0 0.0
          %1394 = vmatpush1.msra.mxu0 0.0
          %1395 = vmatprep.subr.mxu0 0.0
          %1396 = vmatpush1.msra.mxu0 0.0
          %1397 = vmatprep.subr.mxu0 0.0
          %1398 = vmatpush1.msra.mxu0 0.0
          %1399 = vmatprep.subr.mxu0 0.0
          %1400 = vmatpush1.msra.mxu0 0.0
          %1401 = vmatprep.subr.mxu0 0.0
          %1402 = vmatpush1.msra.mxu0 0.0
          %1403 = vmatprep.subr.mxu0 0.0
          %1404 = vmatpush1.msra.mxu0 0.0
          %1405 = vmatprep.subr.mxu0 0.0
          %1406 = vmatpush1.msra.mxu0 %v1373
          %1407 = vmatprep.subr.mxu0 0.0
          %1408 = vmatpush1.msra.mxu0 %v1372
          %1409 = vmatprep.subr.mxu0 0.0
          %1410 = vmatpush1.msra.mxu0 %v1371
          %1411 = vmatprep.subr.mxu0 0.0
          %1412 = vmatpush1.msra.mxu0 %v1370
          %1413 = vmatprep.subr.mxu0 0.0
          %1414 = vmatpush2.msra.mxu0 0.0
          %1415 = vmatprep.subr.mxu0 0.0
          %1416 = vmatpush2.msra.mxu0 0.0
          %1417 = vmatprep.subr.mxu0 0.0
          %1418 = vmatpush2.msra.mxu0 0.0
          %1419 = vmatprep.subr.mxu0 0.0
          %1420 = vmatpush2.msra.mxu0 0.0
          %1421 = vmatprep.subr.mxu0 0.0
          %1422 = vmatpush2.msra.mxu0 0.0
          %1423 = vmatprep.subr.mxu0 0.0
          %1424 = vmatpush2.msra.mxu0 0.0
          %1425 = vmatprep.subr.mxu0 0.0
          %1426 = vmatpush2.msra.mxu0 0.0
          %1427 = vmatprep.subr.mxu0 0.0
          %1428 = vmatpush2.msra.mxu0 0.0
          %1429 = vmatprep.subr.mxu0 0.0
          %1430 = vmatpush2.msra.mxu0 0.0
          %1431 = vmatprep.subr.mxu0 0.0
          %1432 = vmatpush2.msra.mxu0 0.0
          %1433 = vmatprep.subr.mxu0 0.0
          %1434 = vmatpush2.msra.mxu0 0.0
          %1435 = vmatprep.subr.mxu0 0.0
          %1436 = vmatpush2.msra.mxu0 0.0
          %1437 = vmatprep.subr.mxu0 0.0
          %1438 = vmatpush2.msra.mxu0 0.0
          %1439 = vmatprep.subr.mxu0 0.0
          %1440 = vmatpush2.msra.mxu0 0.0
          %1441 = vmatprep.subr.mxu0 0.0
          %1442 = vmatpush2.msra.mxu0 0.0
          %1443 = vmatprep.subr.mxu0 0.0
          %1444 = vmatpush2.msra.mxu0 0.0
          %1445 = vmatprep.mubr.f32.mxu0 0.0
          %1446 = vmatmul.mubr.f32.gmra.mxu0 %v1379
          %v1447 = vpop.f32.mrf.mxu0
          %v1448 = vadd.f32 0.0, %v1447
          %v1449 = vpop.f32.mrf.mxu0
          %1450 = vdwg.mxu0
          %v1452 = vsel %vm696, %v1369, 0
          %1454 = vmatprep.subr.mxu0 0.0
          %1455 = vmatpush1.msra.mxu0 0.0
          %1456 = vmatprep.subr.mxu0 0.0
          %1457 = vmatpush1.msra.mxu0 0.0
          %1458 = vmatprep.subr.mxu0 0.0
          %1459 = vmatpush1.msra.mxu0 0.0
          %1460 = vmatprep.subr.mxu0 0.0
          %1461 = vmatpush1.msra.mxu0 0.0
          %1462 = vmatprep.subr.mxu0 0.0
          %1463 = vmatpush1.msra.mxu0 0.0
          %1464 = vmatprep.subr.mxu0 0.0
          %1465 = vmatpush1.msra.mxu0 0.0
          %1466 = vmatprep.subr.mxu0 0.0
          %1467 = vmatpush1.msra.mxu0 0.0
          %1468 = vmatprep.subr.mxu0 0.0
          %1469 = vmatpush1.msra.mxu0 0.0
          %1470 = vmatprep.subr.mxu0 0.0
          %1471 = vmatpush1.msra.mxu0 0.0
          %1472 = vmatprep.subr.mxu0 0.0
          %1473 = vmatpush1.msra.mxu0 0.0
          %1474 = vmatprep.subr.mxu0 0.0
          %1475 = vmatpush1.msra.mxu0 0.0
          %1476 = vmatprep.subr.mxu0 0.0
          %1477 = vmatpush1.msra.mxu0 0.0
          %1478 = vmatprep.subr.mxu0 0.0
          %1479 = vmatpush1.msra.mxu0 %v1377
          %1480 = vmatprep.subr.mxu0 0.0
          %1481 = vmatpush1.msra.mxu0 %v1376
          %1482 = vmatprep.subr.mxu0 0.0
          %1483 = vmatpush1.msra.mxu0 %v1375
          %1484 = vmatprep.subr.mxu0 0.0
          %1485 = vmatpush1.msra.mxu0 %v1374
          %1486 = vmatprep.subr.mxu0 0.0
          %1487 = vmatpush2.msra.mxu0 0.0
          %1488 = vmatprep.subr.mxu0 0.0
          %1489 = vmatpush2.msra.mxu0 0.0
          %1490 = vmatprep.subr.mxu0 0.0
          %1491 = vmatpush2.msra.mxu0 0.0
          %1492 = vmatprep.subr.mxu0 0.0
          %1493 = vmatpush2.msra.mxu0 0.0
          %1494 = vmatprep.subr.mxu0 0.0
          %1495 = vmatpush2.msra.mxu0 0.0
          %1496 = vmatprep.subr.mxu0 0.0
          %1497 = vmatpush2.msra.mxu0 0.0
          %1498 = vmatprep.subr.mxu0 0.0
          %1499 = vmatpush2.msra.mxu0 0.0
          %1500 = vmatprep.subr.mxu0 0.0
          %1501 = vmatpush2.msra.mxu0 0.0
          %1502 = vmatprep.subr.mxu0 0.0
          %1503 = vmatpush2.msra.mxu0 0.0
          %1504 = vmatprep.subr.mxu0 0.0
          %1505 = vmatpush2.msra.mxu0 0.0
          %1506 = vmatprep.subr.mxu0 0.0
          %1507 = vmatpush2.msra.mxu0 0.0
          %1508 = vmatprep.subr.mxu0 0.0
          %1509 = vmatpush2.msra.mxu0 0.0
          %1510 = vmatprep.subr.mxu0 0.0
          %1511 = vmatpush2.msra.mxu0 0.0
          %1512 = vmatprep.subr.mxu0 0.0
          %1513 = vmatpush2.msra.mxu0 0.0
          %1514 = vmatprep.subr.mxu0 0.0
          %1515 = vmatpush2.msra.mxu0 0.0
          %1516 = vmatprep.subr.mxu0 0.0
          %1517 = vmatpush2.msra.mxu0 0.0
          %1518 = vmatprep.mubr.f32.mxu0 0.0
          %1519 = vmatmul.mubr.f32.gmra.mxu0 %v1452
          %v1520 = vpop.f32.mrf.mxu0
          %v1521 = vadd.f32 0.0, %v1520
          %v1522 = vpop.f32.mrf.mxu0
          %1523 = vdwg.mxu0
          %v1524 = vsel %vm696, %v1448, 0.0
          %v1525 = vsel %vm696, %v1521, 0.0
          %v1526 = vadd.f32 %v1524, %v1525
          %v1527 = vld [vmem:[%s7] sm:$0x1]
          %v1529 = vlaneseq
          %v1530 = vshrl.u32 %v1529, 7
          %v1531 = vsub.s32 0, %v1530
          %v1532 = vrot.slane %v1527, %v1531
          %v1534 = vadd.f32 %v1526, %v1532
          %v1535 = vld [vmem:[%s417] sm:$0xff]
          %v1536 = vadd.f32 %v1534, %v1535
          %v1537 = vsel %vm696, %v1536, 0.0
          %1538 = vadd.xlane.f32.xlu0 %v1537
          %v1539 = vpop.xlane.xlu0 %1538
          %v1540 = vrcp.pop 32.0
          %v1541 = vmul.f32 %v1539, %v1540
          %v1542 = vsub.f32 %v1536, %v1541
          %v1543 = vmul.f32 %v1542, %v1542
          %v1544 = vsel %vm696, %v1543, 0.0
          %1545 = vadd.xlane.f32.xlu0 %v1544
          %v1546 = vpop.xlane.xlu0 %1545
          %v1547 = vmul.f32 %v1546, %v1540
          %v1548 = vadd.f32 %v1547, 1e-05
          %v1549 = vrsqrt.pop %v1548
          %v1550 = vmul.f32 %v1542, %v1549
          %v1551 = vld [vmem:[%s8] sm:$0x1]
          %v1553 = vlaneseq
          %v1554 = vshrl.u32 %v1553, 7
          %v1555 = vsub.s32 0, %v1554
          %v1556 = vrot.slane %v1551, %v1555
          %v1558 = vmul.f32 %v1550, %v1556
          %v1559 = vld [vmem:[%s9] sm:$0x1]
          %v1561 = vlaneseq
          %v1562 = vshrl.u32 %v1561, 7
          %v1563 = vsub.s32 0, %v1562
          %v1564 = vrot.slane %v1559, %v1563
          %v1566 = vadd.f32 %v1558, %v1564
          %1567 = vst.msk [vmem:[%s470] sm:$0xff] %vm696, %v1566
        $region88: #{tpu_custom_call.1} parent=59 // pred_fallthru
          _
        %s1568 = sand.u32 %s273, 1
        %s1569 = scalar_lea.sflag [#allocation8], %s1568
        %s1570 = sand.u32 %s273, 1
        %s1571 = smul.addr %s1570, 8
        %s1572 = scalar_lea.vmem [#allocation15], %s1571
        // Predicated region
        $region89: #{tpu_custom_call.1} parent=59 // pred_check
          %p1573 = pneg %p283
        $region90: #{tpu_custom_call.1} parent=59 // pred_check_branch
          %1575 = sbr.rel (%p1573) target = $region92
        $region91: #{tpu_custom_call.1} parent=59 // pred_region
          %s1577 = ssub.s32 128, 128
          %1578 = vsyncadd %s1569, %s1577
          %s1579 = smul.addr %s35, 128
          %s1580 = scalar_lea.hbm %s10, %s1579
          %s1582 = sshll.u32 %s1572, 4
          %s1583 = int_to_ptr.vmem [resolvable:$true] %s1582
          %1585 = dma.vmem_to_hbm [thread:$0]  %s1583, 128, %s1580, %s1569
        $region92: #{tpu_custom_call.1} parent=59 // pred_fallthru
          _
      $region60: #{tpu_custom_call.1} parent=5 // pred_fallthru
        _
      %p1586 = scmp.le.s32.totalorder 2, %s26
      // Predicated region
      $region93: #{tpu_custom_call.1} parent=5 // pred_check
        %p1587 = pneg %p1586
      $region94: #{tpu_custom_call.1} parent=5 // pred_check_branch
        %1589 = sbr.rel (%p1587) target = $region96
      $region95: #{tpu_custom_call.1} parent=5 // pred_region
        %s1590 = ssub.s32 %s26, 2
        // Predicated region
        $region97: #{tpu_custom_call.1} parent=95 // pred_check
          %p1591 = pneg %p289
        $region98: #{tpu_custom_call.1} parent=95 // pred_check_branch
          %1593 = sbr.rel (%p1591) target = $region100
        $region99: #{tpu_custom_call.1} parent=95 // pred_region
          %s1594 = sand.u32 %s274, 1
          %s1595 = scalar_lea.sflag [#allocation8], %s1594
          %s1596 = sand.u32 %s274, 1
          %s1597 = smul.addr %s1596, 8
          %s1598 = scalar_lea.vmem [#allocation15], %s1597
          %1599 = dma.done %s1595, 128
        $region100: #{tpu_custom_call.1} parent=95 // pred_fallthru
          _
      $region96: #{tpu_custom_call.1} parent=5 // pred_fallthru
        _
    $region6: #{tpu_custom_call.1} parent=1 // loop_footer
      %s30 = sadd.s32 1, %s26
    $region7: #{tpu_custom_call.1} parent=1 // loop_footer_branch
      %25 = sbr.rel target = $region3
    $region8: #{tpu_custom_call.1} parent=1 // loop_exit
      _
    %1600 = vsyncpa [#allocation7], 1
    %s1601 = scalar_lea.sflag [#allocation7], 1
    %1602 = vsyncpa %s1601, 1
    %1603 = vsyncpa [#allocation10], 1
    %s1604 = scalar_lea.sflag [#allocation10], 1
    %1605 = vsyncpa %s1604, 1
    %1606 = vsyncpa [#allocation13], 1
    %1607 = vsyncpa [#allocation8], 1
    %s1608 = scalar_lea.sflag [#allocation8], 1
    %1609 = vsyncpa %s1608, 1

</llo_original>
